<compile_context>
chip_gen: v7x
topology: tpu7x:2x2x1
jax: 0.10.0
libtpu: 0.0.40
codegen_flags: <defaults>
</compile_context>

<pallas_src>
import functools

import jax
import jax.numpy as jnp
from jax import lax
from jax.experimental import pallas as pl
from jax.experimental.pallas import tpu as pltpu


def feature_attention_kernel(x_ref, v_ref, wq_ref, wk_ref, out_ref, attn_ref,
                             *, B, C):
    """Single grid step covering the whole (small) batch.

    x_ref   : (B*C, F)  flattened input rows (row r = (b, c) with r = b*C + c)
    v_ref   : (B*C, F)  depthwise-conv "value", flattened
    wq_ref  : (F, F)    query weight, untransposed, pre-scaled by 1/sqrt(F)
    wk_ref  : (F, F)    key weight, untransposed
    out_ref : (B*C, F)  attended output + residual
    attn_ref: (B, F, F) attention maps
    """
    x_all = x_ref[...]                                    # (B*C, F)
    v_all = v_ref[...]                                    # (B*C, F)

    # qT[f, r] = sum_g Wq_scaled[f, g] * x_all[r, g]  == (x @ Wq^T)^T (scaled)
    # A @ B^T form: no dim-0 contraction, no explicit transpose of x/q/k.
    qT = lax.dot_general(wq_ref[...], x_all, (((1,), (1,)), ((), ())),
                         preferred_element_type=jnp.float32)           # (F, B*C)
    kT = lax.dot_general(wk_ref[...], x_all, (((1,), (1,)), ((), ())),
                         preferred_element_type=jnp.float32)           # (F, B*C)

    for b in range(B):                                    # B tiny & static
        qTb = qT[:, b * C:(b + 1) * C]                    # (F, C)
        kTb = kT[:, b * C:(b + 1) * C]                    # (F, C)

        # scores[f, g] = sum_c qTb[f, c] * kTb[g, c]   (scale already in Wq)
        scores = lax.dot_general(qTb, kTb, (((1,), (1,)), ((), ())),
                                 preferred_element_type=jnp.float32)   # (F, F)

        # softmax over the last axis; divide pushed to the EUP slot.
        m = jnp.max(scores, axis=-1, keepdims=True)
        p = jnp.exp(scores - m)
        denom = jnp.sum(p, axis=-1, keepdims=True)
        attn = p * pl.reciprocal(denom, approx=True)      # (F, F)
        attn_ref[b] = attn

        v_b = v_all[b * C:(b + 1) * C]                    # (C, F)
        x_b = x_all[b * C:(b + 1) * C]                    # (C, F)
        # out[c, f] = sum_g value[c, g] * attn[f, g]  == (attn @ value^T)^T
        out_cf = lax.dot_general(v_b, attn, (((1,), (1,)), ((), ())),
                                 preferred_element_type=jnp.float32)   # (C, F)
        out_ref[pl.ds(b * C, C), :] = out_cf + x_b        # residual add


def feature_attention(x, wq, wk, wconv, bconv):
    """x: (B, C, H, W) float32.  wq/wk: (F, F) PyTorch Linear weights (out, in).
    wconv: (C, 1, 3, 3), bconv: (C,).
    Returns (output (B, C, H, W), attention (B, F, F))."""
    B, C, H, W = x.shape
    assert H == W, "FeatureAttention reshapes with `width` twice; requires H == W"
    F = H * W
    scale = float(F) ** 0.5

    # Depthwise 3x3 conv (padding=1, groups=C) + bias, computed by XLA in the
    # wrapper (per perf review) and shipped to the kernel as a flat slab.
    value = lax.conv_general_dilated(
        x, wconv, window_strides=(1, 1), padding="SAME",
        feature_group_count=C,
        dimension_numbers=("NCHW", "OIHW", "NCHW")) + bconv.reshape(1, C, 1, 1)

    x_2d = x.reshape(B * C, F).astype(jnp.float32)
    v_2d = value.reshape(B * C, F).astype(jnp.float32)
    wq_scaled = (wq / scale).astype(jnp.float32)          # fold 1/sqrt(F) into Wq
    wk_f = wk.astype(jnp.float32)

    kernel = functools.partial(feature_attention_kernel, B=B, C=C)

    out_2d, attn = pl.pallas_call(
        kernel,
        out_shape=(jax.ShapeDtypeStruct((B * C, F), jnp.float32),
                   jax.ShapeDtypeStruct((B, F, F), jnp.float32)),
        grid=(1,),
        in_specs=[
            pl.BlockSpec((B * C, F), lambda i: (0, 0)),
            pl.BlockSpec((B * C, F), lambda i: (0, 0)),
            pl.BlockSpec((F, F), lambda i: (0, 0)),
            pl.BlockSpec((F, F), lambda i: (0, 0)),
        ],
        out_specs=(
            pl.BlockSpec((B * C, F), lambda i: (0, 0)),
            pl.BlockSpec((B, F, F), lambda i: (0, 0, 0)),
        ),
        compiler_params=pltpu.CompilerParams(
            dimension_semantics=("arbitrary",)),
    )(x_2d, v_2d, wq_scaled, wk_f)

    output = out_2d.reshape(B, C, H, W)
    return output, attn


def feature_attention_reference(x, wq, wk, wconv, bconv):
    """Pure-JAX reference matching the PyTorch forward (eval mode)."""
    B, C, H, W = x.shape
    F = H * W
    value = lax.conv_general_dilated(
        x, wconv, window_strides=(1, 1), padding="SAME",
        feature_group_count=C,
        dimension_numbers=("NCHW", "OIHW", "NCHW")) + bconv.reshape(1, C, 1, 1)
    xf = x.reshape(B, C, F)
    vf = value.reshape(B, C, F)
    q = jnp.einsum("bcf,gf->bcg", xf, wq)    # Linear: y = x @ W^T
    k = jnp.einsum("bcf,gf->bcg", xf, wk)
    qT = jnp.swapaxes(q, 1, 2)
    kT = jnp.swapaxes(k, 1, 2)
    vT = jnp.swapaxes(vf, 1, 2)
    attn = jnp.matmul(qT / (F ** 0.5), jnp.swapaxes(kT, 1, 2))
    attn = jax.nn.softmax(attn, axis=-1)
    out = jnp.matmul(attn, vT)
    out = jnp.swapaxes(out, 1, 2) + xf
    return out.reshape(B, C, H, W), attn


if __name__ == "__main__":
    B, C, H, W = 2, 4, 16, 16        # num_filters=4, feature_size = H*W = 256
    F = H * W

    key = jax.random.PRNGKey(0)
    kx, kq, kk, kc, kb = jax.random.split(key, 5)
    x = jax.random.normal(kx, (B, C, H, W), dtype=jnp.float32)
    wq = jax.random.normal(kq, (F, F), dtype=jnp.float32) * (1.0 / F ** 0.5)
    wk = jax.random.normal(kk, (F, F), dtype=jnp.float32) * (1.0 / F ** 0.5)
    wconv = jax.random.normal(kc, (C, 1, 3, 3), dtype=jnp.float32) * (1.0 / 3.0)
    bconv = jax.random.normal(kb, (C,), dtype=jnp.float32) * 0.1

    out, attn = feature_attention(x, wq, wk, wconv, bconv)
    jax.block_until_ready((out, attn))

    out_ref, attn_ref = feature_attention_reference(x, wq, wk, wconv, bconv)
    assert out.shape == (B, C, H, W) and attn.shape == (B, F, F)
    assert jnp.allclose(out, out_ref, atol=1e-2, rtol=1e-2), (
        float(jnp.max(jnp.abs(out - out_ref))))
    assert jnp.allclose(attn, attn_ref, atol=1e-3, rtol=1e-2), (
        float(jnp.max(jnp.abs(attn - attn_ref))))

    print("KERNEL_OK")
</pallas_src>

<mosaic_0001>
module attributes {stable_mosaic.version = 11 : i64} {
  func.func @feature_attention_kernel(%arg0: i32, %arg1: memref<8x256xf32, #tpu.memory_space<vmem>>, %arg2: memref<8x256xf32, #tpu.memory_space<vmem>>, %arg3: memref<256x256xf32, #tpu.memory_space<vmem>>, %arg4: memref<256x256xf32, #tpu.memory_space<vmem>>, %arg5: memref<8x256xf32, #tpu.memory_space<vmem>>, %arg6: memref<2x256x256xf32, #tpu.memory_space<vmem>>) attributes {dimension_semantics = [#tpu.dimension_semantics<arbitrary>], iteration_bounds = array<i64: 1>, scalar_prefetch = 0 : i64, scratch_operands = 0 : i64, tpu.core_type = #tpu.core_type<tc>, window_params = [{pipeline_mode = #tpu.pipeline_mode<synchronous>, transform_indices = @transform_0, window_bounds = array<i64: 8, 256>}, {pipeline_mode = #tpu.pipeline_mode<synchronous>, transform_indices = @transform_1, window_bounds = array<i64: 8, 256>}, {pipeline_mode = #tpu.pipeline_mode<synchronous>, transform_indices = @transform_2, window_bounds = array<i64: 256, 256>}, {pipeline_mode = #tpu.pipeline_mode<synchronous>, transform_indices = @transform_3, window_bounds = array<i64: 256, 256>}, {pipeline_mode = #tpu.pipeline_mode<synchronous>, transform_indices = @transform_4, window_bounds = array<i64: 8, 256>}, {pipeline_mode = #tpu.pipeline_mode<synchronous>, transform_indices = @transform_5, window_bounds = array<i64: 2, 256, 256>}]} {
    %c0 = arith.constant 0 : index
    %c0_0 = arith.constant 0 : index
    %0 = vector.load %arg1[%c0, %c0_0] : memref<8x256xf32, #tpu.memory_space<vmem>>, vector<8x256xf32>
    %c0_1 = arith.constant 0 : index
    %c0_2 = arith.constant 0 : index
    %1 = vector.load %arg2[%c0_1, %c0_2] : memref<8x256xf32, #tpu.memory_space<vmem>>, vector<8x256xf32>
    %c0_3 = arith.constant 0 : index
    %c0_4 = arith.constant 0 : index
    %2 = vector.load %arg3[%c0_3, %c0_4] : memref<256x256xf32, #tpu.memory_space<vmem>>, vector<256x256xf32>
    %cst = arith.constant dense<0.000000e+00> : vector<256x8xf32>
    %3 = tpu.matmul %2, %0, %cst {dimension_numbers = #tpu.dot_dimension_numbers<[1], [1], [0], [0], [0, 0, 1, 0], [], []>} : vector<256x256xf32>, vector<8x256xf32>, vector<256x8xf32> -> vector<256x8xf32>
    %c0_5 = arith.constant 0 : index
    %c0_6 = arith.constant 0 : index
    %4 = vector.load %arg4[%c0_5, %c0_6] : memref<256x256xf32, #tpu.memory_space<vmem>>, vector<256x256xf32>
    %cst_7 = arith.constant dense<0.000000e+00> : vector<256x8xf32>
    %5 = tpu.matmul %4, %0, %cst_7 {dimension_numbers = #tpu.dot_dimension_numbers<[1], [1], [0], [0], [0, 0, 1, 0], [], []>} : vector<256x256xf32>, vector<8x256xf32>, vector<256x8xf32> -> vector<256x8xf32>
    %6 = vector.extract_strided_slice %3 {offsets = [0, 0], sizes = [256, 4], strides = [1, 1]} : vector<256x8xf32> to vector<256x4xf32>
    %7 = vector.extract_strided_slice %5 {offsets = [0, 0], sizes = [256, 4], strides = [1, 1]} : vector<256x8xf32> to vector<256x4xf32>
    %cst_8 = arith.constant dense<0.000000e+00> : vector<256x256xf32>
    %8 = tpu.matmul %6, %7, %cst_8 {dimension_numbers = #tpu.dot_dimension_numbers<[1], [1], [0], [0], [0, 0, 1, 0], [], []>} : vector<256x4xf32>, vector<256x4xf32>, vector<256x256xf32> -> vector<256x256xf32>
    %cst_9 = arith.constant dense<0xFF800000> : vector<256xf32>
    %9 = vector.multi_reduction <maximumf>, %8, %cst_9 [1] : vector<256x256xf32> to vector<256xf32>
    %10 = vector.shape_cast %9 : vector<256xf32> to vector<256x1xf32>
    %11 = vector.broadcast %10 : vector<256x1xf32> to vector<256x256xf32>
    %12 = arith.subf %8, %11 : vector<256x256xf32>
    %13 = math.exp %12 : vector<256x256xf32>
    %cst_10 = arith.constant dense<0.000000e+00> : vector<256xf32>
    %14 = vector.multi_reduction <add>, %13, %cst_10 [1] : vector<256x256xf32> to vector<256xf32>
    %15 = vector.shape_cast %14 : vector<256xf32> to vector<256x1xf32>
    %16 = tpu.reciprocal %15 {approx = true} : vector<256x1xf32> -> vector<256x1xf32>
    %17 = vector.broadcast %16 : vector<256x1xf32> to vector<256x256xf32>
    %18 = arith.mulf %13, %17 : vector<256x256xf32>
    %c0_11 = arith.constant 0 : index
    %c0_12 = arith.constant 0 : index
    %c0_13 = arith.constant 0 : index
    %19 = vector.load %arg6[%c0_11, %c0_12, %c0_13] : memref<2x256x256xf32, #tpu.memory_space<vmem>>, vector<1x256x256xf32>
    %20 = vector.shape_cast %19 : vector<1x256x256xf32> to vector<256x256xf32>
    %21 = vector.shape_cast %18 : vector<256x256xf32> to vector<1x256x256xf32>
    tpu.vector_store %arg6[%c0_11, %c0_12, %c0_13], %21 {strides = array<i32>} : memref<2x256x256xf32, #tpu.memory_space<vmem>>, vector<1x256x256xf32>,
    %22 = vector.extract_strided_slice %1 {offsets = [0, 0], sizes = [4, 256], strides = [1, 1]} : vector<8x256xf32> to vector<4x256xf32>
    %23 = vector.extract_strided_slice %0 {offsets = [0, 0], sizes = [4, 256], strides = [1, 1]} : vector<8x256xf32> to vector<4x256xf32>
    %cst_14 = arith.constant dense<0.000000e+00> : vector<4x256xf32>
    %24 = tpu.matmul %22, %18, %cst_14 {dimension_numbers = #tpu.dot_dimension_numbers<[1], [1], [0], [0], [0, 0, 1, 0], [], []>} : vector<4x256xf32>, vector<256x256xf32>, vector<4x256xf32> -> vector<4x256xf32>
    %25 = arith.addf %24, %23 : vector<4x256xf32>
    %c0_15 = arith.constant 0 : index
    %c0_16 = arith.constant 0 : index
    %26 = vector.load %arg5[%c0_15, %c0_16] : memref<8x256xf32, #tpu.memory_space<vmem>>, vector<4x256xf32>
    tpu.vector_store %arg5[%c0_15, %c0_16], %25 {strides = array<i32>} : memref<8x256xf32, #tpu.memory_space<vmem>>, vector<4x256xf32>,
    %27 = vector.extract_strided_slice %3 {offsets = [0, 4], sizes = [256, 4], strides = [1, 1]} : vector<256x8xf32> to vector<256x4xf32>
    %28 = vector.extract_strided_slice %5 {offsets = [0, 4], sizes = [256, 4], strides = [1, 1]} : vector<256x8xf32> to vector<256x4xf32>
    %cst_17 = arith.constant dense<0.000000e+00> : vector<256x256xf32>
    %29 = tpu.matmul %27, %28, %cst_17 {dimension_numbers = #tpu.dot_dimension_numbers<[1], [1], [0], [0], [0, 0, 1, 0], [], []>} : vector<256x4xf32>, vector<256x4xf32>, vector<256x256xf32> -> vector<256x256xf32>
    %cst_18 = arith.constant dense<0xFF800000> : vector<256xf32>
    %30 = vector.multi_reduction <maximumf>, %29, %cst_18 [1] : vector<256x256xf32> to vector<256xf32>
    %31 = vector.shape_cast %30 : vector<256xf32> to vector<256x1xf32>
    %32 = vector.broadcast %31 : vector<256x1xf32> to vector<256x256xf32>
    %33 = arith.subf %29, %32 : vector<256x256xf32>
    %34 = math.exp %33 : vector<256x256xf32>
    %cst_19 = arith.constant dense<0.000000e+00> : vector<256xf32>
    %35 = vector.multi_reduction <add>, %34, %cst_19 [1] : vector<256x256xf32> to vector<256xf32>
    %36 = vector.shape_cast %35 : vector<256xf32> to vector<256x1xf32>
    %37 = tpu.reciprocal %36 {approx = true} : vector<256x1xf32> -> vector<256x1xf32>
    %38 = vector.broadcast %37 : vector<256x1xf32> to vector<256x256xf32>
    %39 = arith.mulf %34, %38 : vector<256x256xf32>
    %c1 = arith.constant 1 : index
    %c0_20 = arith.constant 0 : index
    %c0_21 = arith.constant 0 : index
    %40 = vector.load %arg6[%c1, %c0_20, %c0_21] : memref<2x256x256xf32, #tpu.memory_space<vmem>>, vector<1x256x256xf32>
    %41 = vector.shape_cast %40 : vector<1x256x256xf32> to vector<256x256xf32>
    %42 = vector.shape_cast %39 : vector<256x256xf32> to vector<1x256x256xf32>
    tpu.vector_store %arg6[%c1, %c0_20, %c0_21], %42 {strides = array<i32>} : memref<2x256x256xf32, #tpu.memory_space<vmem>>, vector<1x256x256xf32>,
    %43 = vector.extract_strided_slice %1 {offsets = [4, 0], sizes = [4, 256], strides = [1, 1]} : vector<8x256xf32> to vector<4x256xf32>
    %44 = vector.extract_strided_slice %0 {offsets = [4, 0], sizes = [4, 256], strides = [1, 1]} : vector<8x256xf32> to vector<4x256xf32>
    %cst_22 = arith.constant dense<0.000000e+00> : vector<4x256xf32>
    %45 = tpu.matmul %43, %39, %cst_22 {dimension_numbers = #tpu.dot_dimension_numbers<[1], [1], [0], [0], [0, 0, 1, 0], [], []>} : vector<4x256xf32>, vector<256x256xf32>, vector<4x256xf32> -> vector<4x256xf32>
    %46 = arith.addf %45, %44 : vector<4x256xf32>
    %c4 = arith.constant 4 : index
    %c0_23 = arith.constant 0 : index
    %47 = vector.load %arg5[%c4, %c0_23] : memref<8x256xf32, #tpu.memory_space<vmem>>, vector<4x256xf32>
    tpu.vector_store %arg5[%c4, %c0_23], %46 {strides = array<i32>} : memref<8x256xf32, #tpu.memory_space<vmem>>, vector<4x256xf32>,
    return
  }
  func.func @transform_0(%arg0: i32) -> (i32, i32) {
    %c0_i32 = arith.constant 0 : i32
    %c0_i32_0 = arith.constant 0 : i32
    %c0_i32_1 = arith.constant 0 : i32
    return %c0_i32, %c0_i32_0 : i32, i32
  }
  func.func @transform_1(%arg0: i32) -> (i32, i32) {
    %c0_i32 = arith.constant 0 : i32
    %c0_i32_0 = arith.constant 0 : i32
    %c0_i32_1 = arith.constant 0 : i32
    return %c0_i32, %c0_i32_0 : i32, i32
  }
  func.func @transform_2(%arg0: i32) -> (i32, i32) {
    %c0_i32 = arith.constant 0 : i32
    %c0_i32_0 = arith.constant 0 : i32
    %c0_i32_1 = arith.constant 0 : i32
    return %c0_i32, %c0_i32_0 : i32, i32
  }
  func.func @transform_3(%arg0: i32) -> (i32, i32) {
    %c0_i32 = arith.constant 0 : i32
    %c0_i32_0 = arith.constant 0 : i32
    %c0_i32_1 = arith.constant 0 : i32
    return %c0_i32, %c0_i32_0 : i32, i32
  }
  func.func @transform_4(%arg0: i32) -> (i32, i32) {
    %c0_i32 = arith.constant 0 : i32
    %c0_i32_0 = arith.constant 0 : i32
    %c0_i32_1 = arith.constant 0 : i32
    return %c0_i32, %c0_i32_0 : i32, i32
  }
  func.func @transform_5(%arg0: i32) -> (i32, i32, i32) {
    %c0_i32 = arith.constant 0 : i32
    %c0_i32_0 = arith.constant 0 : i32
    %c0_i32_1 = arith.constant 0 : i32
    %c0_i32_2 = arith.constant 0 : i32
    return %c0_i32, %c0_i32_0, %c0_i32_1 : i32, i32, i32
  }
}

</mosaic_0001>

<llo_original>
// kernel: tpu_custom_call.1
$region0: #{tpu_custom_call.1}
  #allocation0 [shape = 'u32[]', space=smem, size = 0x4, offset = 0x4, fixed_abs, tag = 'smem constant byte address 0x4 - core index']
  #allocation1 [shape = 'u32[144,128]{1,0:T(1,128)}', space=vmem, size = 0x12000, scoped, tag = 'internal scratch']
  %s0 = inlined_call_operand.hbm [shape: f32[8,256], index: 0, kind: input, shape index: {}]
  %s1 = inlined_call_operand.hbm [shape: f32[8,256], index: 1, kind: input, shape index: {}]
  %s2 = inlined_call_operand.hbm [shape: f32[256,256], index: 2, kind: input, shape index: {}]
  %s3 = inlined_call_operand.hbm [shape: f32[256,256], index: 3, kind: input, shape index: {}]
  %s4 = inlined_call_operand.hbm [shape: f32[8,256], index: 4, kind: output, shape index: {0}]
  %s5 = inlined_call_operand.hbm [shape: f32[2,256,256], index: 5, kind: output, shape index: {1}]
  %6 = xla_tuple %s4, %s5
  %s7 = sld [smem:[#allocation0]]
  $region50: #{tpu_custom_call.1} parent=0
    _
  %s9 = ssub.s32 1, %s7
  %s10 = scalar_select 0, %s9, %s7
  $region1: #{tpu_custom_call.1} parent=0
    #allocation2 [shape = 'u8[8192]{0}', space=vmem, size = 0x2000, scoped, tag = 'input window, operand 0, single buffered']
    #allocation3 [shape = 's32[1]{0}', space=sflag, size = 0x4, scoped, tag = 'scoped memory for tpu_custom_call.1']
    #allocation4 [shape = 's32[1]{0}', space=sflag, size = 0x4, scoped, tag = 'scoped memory for tpu_custom_call.1']
    #allocation5 [shape = 'u8[8192]{0}', space=vmem, size = 0x2000, scoped, tag = 'input window, operand 1, single buffered']
    #allocation6 [shape = 's32[1]{0}', space=sflag, size = 0x4, scoped, tag = 'scoped memory for tpu_custom_call.1']
    #allocation7 [shape = 'u8[262144]{0}', space=vmem, size = 0x40000, scoped, tag = 'input window, operand 2, single buffered']
    #allocation8 [shape = 'u8[262144]{0}', space=vmem, size = 0x40000, scoped, tag = 'input window, operand 3, single buffered']
    #allocation9 [shape = 's32[1]{0}', space=sflag, size = 0x4, scoped, tag = 'scoped memory for tpu_custom_call.1']
    #allocation10 [shape = 'u8[8192]{0}', space=vmem, size = 0x2000, scoped, tag = 'output window, operand 0, single buffered']
    #allocation11 [shape = 'u8[524288]{0}', space=vmem, size = 0x80000, scoped, tag = 'output window, operand 1, single buffered']
    #allocation12 [shape = 's32[1]{0}', space=sflag, size = 0x4, scoped, tag = 'scoped memory for tpu_custom_call.1']
    %11 = vsyncpa [#allocation3], 0
    %12 = vsyncpa [#allocation6], 0
    %13 = vsyncpa [#allocation9], 0
    %14 = vsyncpa [#allocation4], 0
    %15 = vsyncpa [#allocation12], 0
    // Predicated region
    $region2: #{tpu_custom_call.1} parent=1 // pred_check
      _
    $region3: #{tpu_custom_call.1} parent=1 // pred_check_branch
      %17 = sbr.rel (0) target = $region5
    $region4: #{tpu_custom_call.1} parent=1 // pred_region
      %s19 = ssub.s32 256, 256
      %20 = vsyncadd [#allocation3], %s19
      %s22 = sshll.u32 [#allocation2], 4
      %s23 = int_to_ptr.vmem [resolvable:$true] %s22
      %25 = dma.hbm_to_vmem [thread:$0]  %s0, 256, %s23, [#allocation3]
    $region5: #{tpu_custom_call.1} parent=1 // pred_fallthru
      _
    // Predicated region
    $region6: #{tpu_custom_call.1} parent=1 // pred_check
      _
    $region7: #{tpu_custom_call.1} parent=1 // pred_check_branch
      %27 = sbr.rel (0) target = $region9
    $region8: #{tpu_custom_call.1} parent=1 // pred_region
      %s29 = ssub.s32 256, 256
      %30 = vsyncadd [#allocation6], %s29
      %s32 = sshll.u32 [#allocation5], 4
      %s33 = int_to_ptr.vmem [resolvable:$true] %s32
      %35 = dma.hbm_to_vmem [thread:$0]  %s1, 256, %s33, [#allocation6]
    $region9: #{tpu_custom_call.1} parent=1 // pred_fallthru
      _
    // Predicated region
    $region10: #{tpu_custom_call.1} parent=1 // pred_check
      _
    $region11: #{tpu_custom_call.1} parent=1 // pred_check_branch
      %37 = sbr.rel (0) target = $region13
    $region12: #{tpu_custom_call.1} parent=1 // pred_region
      %s39 = ssub.s32 8192, 8192
      %40 = vsyncadd [#allocation6], %s39
      %s41 = sshll.u32 [#allocation7], 4
      %s42 = int_to_ptr.vmem [resolvable:$true] %s41
      %47 = dma.hbm_to_vmem [thread:$0]  %s2, 8192, %s42, [#allocation6], 256, 256, 16
    $region13: #{tpu_custom_call.1} parent=1 // pred_fallthru
      _
    // Predicated region
    $region14: #{tpu_custom_call.1} parent=1 // pred_check
      _
    $region15: #{tpu_custom_call.1} parent=1 // pred_check_branch
      %49 = sbr.rel (0) target = $region17
    $region16: #{tpu_custom_call.1} parent=1 // pred_region
      %s51 = ssub.s32 8192, 8192
      %52 = vsyncadd [#allocation9], %s51
      %s53 = sshll.u32 [#allocation8], 4
      %s54 = int_to_ptr.vmem [resolvable:$true] %s53
      %59 = dma.hbm_to_vmem [thread:$0]  %s3, 8192, %s54, [#allocation9], 256, 256, 16
    $region17: #{tpu_custom_call.1} parent=1 // pred_fallthru
      _
    // Predicated region
    $region18: #{tpu_custom_call.1} parent=1 // pred_check
      _
    $region19: #{tpu_custom_call.1} parent=1 // pred_check_branch
      %61 = sbr.rel (0) target = $region21
    $region20: #{tpu_custom_call.1} parent=1 // pred_region
      %62 = dma.done [#allocation3], 256
    $region21: #{tpu_custom_call.1} parent=1 // pred_fallthru
      _
    // Predicated region
    $region22: #{tpu_custom_call.1} parent=1 // pred_check
      _
    $region23: #{tpu_custom_call.1} parent=1 // pred_check_branch
      %64 = sbr.rel (0) target = $region25
    $region24: #{tpu_custom_call.1} parent=1 // pred_region
      %65 = dma.done [#allocation6], 256
    $region25: #{tpu_custom_call.1} parent=1 // pred_fallthru
      _
    // Predicated region
    $region26: #{tpu_custom_call.1} parent=1 // pred_check
      _
    $region27: #{tpu_custom_call.1} parent=1 // pred_check_branch
      %67 = sbr.rel (0) target = $region29
    $region28: #{tpu_custom_call.1} parent=1 // pred_region
      %68 = dma.done [#allocation6], 8192
    $region29: #{tpu_custom_call.1} parent=1 // pred_fallthru
      _
    // Predicated region
    $region30: #{tpu_custom_call.1} parent=1 // pred_check
      _
    $region31: #{tpu_custom_call.1} parent=1 // pred_check_branch
      %70 = sbr.rel (0) target = $region33
    $region32: #{tpu_custom_call.1} parent=1 // pred_region
      %71 = dma.done [#allocation9], 8192
    $region33: #{tpu_custom_call.1} parent=1 // pred_fallthru
      _
    %v72 = vld [vmem:[#allocation2] sm:$0xff]
    %v73 = vld [vmem:[#allocation2 + $0x8] sm:$0xff]
    %v74 = vld [vmem:[#allocation5] sm:$0xff]
    %v75 = vld [vmem:[#allocation5 + $0x8] sm:$0xff]
    %v76 = vld [vmem:[#allocation7] sm:$0xff]
    %v77 = vld [vmem:[#allocation7 + $0x8] sm:$0xff]
    %v78 = vld [vmem:[#allocation7 + $0x10] sm:$0xff]
    %v79 = vld [vmem:[#allocation7 + $0x18] sm:$0xff]
    %v80 = vld [vmem:[#allocation7 + $0x20] sm:$0xff]
    %v81 = vld [vmem:[#allocation7 + $0x28] sm:$0xff]
    %v82 = vld [vmem:[#allocation7 + $0x30] sm:$0xff]
    %v83 = vld [vmem:[#allocation7 + $0x38] sm:$0xff]
    %v84 = vld [vmem:[#allocation7 + $0x40] sm:$0xff]
    %v85 = vld [vmem:[#allocation7 + $0x48] sm:$0xff]
    %v86 = vld [vmem:[#allocation7 + $0x50] sm:$0xff]
    %v87 = vld [vmem:[#allocation7 + $0x58] sm:$0xff]
    %v88 = vld [vmem:[#allocation7 + $0x60] sm:$0xff]
    %v89 = vld [vmem:[#allocation7 + $0x68] sm:$0xff]
    %v90 = vld [vmem:[#allocation7 + $0x70] sm:$0xff]
    %v91 = vld [vmem:[#allocation7 + $0x78] sm:$0xff]
    %v92 = vld [vmem:[#allocation7 + $0x80] sm:$0xff]
    %v93 = vld [vmem:[#allocation7 + $0x88] sm:$0xff]
    %v94 = vld [vmem:[#allocation7 + $0x90] sm:$0xff]
    %v95 = vld [vmem:[#allocation7 + $0x98] sm:$0xff]
    %v96 = vld [vmem:[#allocation7 + $0xa0] sm:$0xff]
    %v97 = vld [vmem:[#allocation7 + $0xa8] sm:$0xff]
    %v98 = vld [vmem:[#allocation7 + $0xb0] sm:$0xff]
    %v99 = vld [vmem:[#allocation7 + $0xb8] sm:$0xff]
    %v100 = vld [vmem:[#allocation7 + $0xc0] sm:$0xff]
    %v101 = vld [vmem:[#allocation7 + $0xc8] sm:$0xff]
    %v102 = vld [vmem:[#allocation7 + $0xd0] sm:$0xff]
    %v103 = vld [vmem:[#allocation7 + $0xd8] sm:$0xff]
    %v104 = vld [vmem:[#allocation7 + $0xe0] sm:$0xff]
    %v105 = vld [vmem:[#allocation7 + $0xe8] sm:$0xff]
    %v106 = vld [vmem:[#allocation7 + $0xf0] sm:$0xff]
    %v107 = vld [vmem:[#allocation7 + $0xf8] sm:$0xff]
    %v108 = vld [vmem:[#allocation7 + $0x100] sm:$0xff]
    %v109 = vld [vmem:[#allocation7 + $0x108] sm:$0xff]
    %v110 = vld [vmem:[#allocation7 + $0x110] sm:$0xff]
    %v111 = vld [vmem:[#allocation7 + $0x118] sm:$0xff]
    %v112 = vld [vmem:[#allocation7 + $0x120] sm:$0xff]
    %v113 = vld [vmem:[#allocation7 + $0x128] sm:$0xff]
    %v114 = vld [vmem:[#allocation7 + $0x130] sm:$0xff]
    %v115 = vld [vmem:[#allocation7 + $0x138] sm:$0xff]
    %v116 = vld [vmem:[#allocation7 + $0x140] sm:$0xff]
    %v117 = vld [vmem:[#allocation7 + $0x148] sm:$0xff]
    %v118 = vld [vmem:[#allocation7 + $0x150] sm:$0xff]
    %v119 = vld [vmem:[#allocation7 + $0x158] sm:$0xff]
    %v120 = vld [vmem:[#allocation7 + $0x160] sm:$0xff]
    %v121 = vld [vmem:[#allocation7 + $0x168] sm:$0xff]
    %v122 = vld [vmem:[#allocation7 + $0x170] sm:$0xff]
    %v123 = vld [vmem:[#allocation7 + $0x178] sm:$0xff]
    %v124 = vld [vmem:[#allocation7 + $0x180] sm:$0xff]
    %v125 = vld [vmem:[#allocation7 + $0x188] sm:$0xff]
    %v126 = vld [vmem:[#allocation7 + $0x190] sm:$0xff]
    %v127 = vld [vmem:[#allocation7 + $0x198] sm:$0xff]
    %v128 = vld [vmem:[#allocation7 + $0x1a0] sm:$0xff]
    %v129 = vld [vmem:[#allocation7 + $0x1a8] sm:$0xff]
    %v130 = vld [vmem:[#allocation7 + $0x1b0] sm:$0xff]
    %v131 = vld [vmem:[#allocation7 + $0x1b8] sm:$0xff]
    %v132 = vld [vmem:[#allocation7 + $0x1c0] sm:$0xff]
    %v133 = vld [vmem:[#allocation7 + $0x1c8] sm:$0xff]
    %v134 = vld [vmem:[#allocation7 + $0x1d0] sm:$0xff]
    %v135 = vld [vmem:[#allocation7 + $0x1d8] sm:$0xff]
    %v136 = vld [vmem:[#allocation7 + $0x1e0] sm:$0xff]
    %v137 = vld [vmem:[#allocation7 + $0x1e8] sm:$0xff]
    %v138 = vld [vmem:[#allocation7 + $0x1f0] sm:$0xff]
    %v139 = vld [vmem:[#allocation7 + $0x1f8] sm:$0xff]
    %140 = vmatprep.subr.mxu0 %v73
    %141 = vmatpush1.xpose.msra.mxu0 %v72
    %142 = vmatprep.subr.mxu0 0.0
    %143 = vmatpush1.xpose.msra.mxu0 0.0
    %144 = vmatprep.subr.mxu0 0.0
    %145 = vmatpush1.xpose.msra.mxu0 0.0
    %146 = vmatprep.subr.mxu0 0.0
    %147 = vmatpush1.xpose.msra.mxu0 0.0
    %148 = vmatprep.subr.mxu0 0.0
    %149 = vmatpush1.xpose.msra.mxu0 0.0
    %150 = vmatprep.subr.mxu0 0.0
    %151 = vmatpush1.xpose.msra.mxu0 0.0
    %152 = vmatprep.subr.mxu0 0.0
    %153 = vmatpush1.xpose.msra.mxu0 0.0
    %154 = vmatprep.subr.mxu0 0.0
    %155 = vmatpush1.xpose.msra.mxu0 0.0
    %156 = vmatprep.subr.mxu0 0.0
    %157 = vmatpush1.xpose.msra.mxu0 0.0
    %158 = vmatprep.subr.mxu0 0.0
    %159 = vmatpush1.xpose.msra.mxu0 0.0
    %160 = vmatprep.subr.mxu0 0.0
    %161 = vmatpush1.xpose.msra.mxu0 0.0
    %162 = vmatprep.subr.mxu0 0.0
    %163 = vmatpush1.xpose.msra.mxu0 0.0
    %164 = vmatprep.subr.mxu0 0.0
    %165 = vmatpush1.xpose.msra.mxu0 0.0
    %166 = vmatprep.subr.mxu0 0.0
    %167 = vmatpush1.xpose.msra.mxu0 0.0
    %168 = vmatprep.subr.mxu0 0.0
    %169 = vmatpush1.xpose.msra.mxu0 0.0
    %170 = vmatprep.subr.mxu0 0.0
    %171 = vmatpush1.xpose.msra.mxu0 0.0
    %172 = vmatprep.subr.mxu0 0.0
    %173 = vmatpush1.xpose.msra.mxu0 0.0
    %174 = vmatprep.subr.mxu0 0.0
    %175 = vmatpush1.xpose.msra.mxu0 0.0
    %176 = vmatprep.subr.mxu0 0.0
    %177 = vmatpush1.xpose.msra.mxu0 0.0
    %178 = vmatprep.subr.mxu0 0.0
    %179 = vmatpush1.xpose.msra.mxu0 0.0
    %180 = vmatprep.subr.mxu0 0.0
    %181 = vmatpush1.xpose.msra.mxu0 0.0
    %182 = vmatprep.subr.mxu0 0.0
    %183 = vmatpush1.xpose.msra.mxu0 0.0
    %184 = vmatprep.subr.mxu0 0.0
    %185 = vmatpush1.xpose.msra.mxu0 0.0
    %186 = vmatprep.subr.mxu0 0.0
    %187 = vmatpush1.xpose.msra.mxu0 0.0
    %188 = vmatprep.subr.mxu0 0.0
    %189 = vmatpush1.xpose.msra.mxu0 0.0
    %190 = vmatprep.subr.mxu0 0.0
    %191 = vmatpush1.xpose.msra.mxu0 0.0
    %192 = vmatprep.subr.mxu0 0.0
    %193 = vmatpush1.xpose.msra.mxu0 0.0
    %194 = vmatprep.subr.mxu0 0.0
    %195 = vmatpush1.xpose.msra.mxu0 0.0
    %196 = vmatprep.subr.mxu0 0.0
    %197 = vmatpush1.xpose.msra.mxu0 0.0
    %198 = vmatprep.subr.mxu0 0.0
    %199 = vmatpush1.xpose.msra.mxu0 0.0
    %200 = vmatprep.subr.mxu0 0.0
    %201 = vmatpush1.xpose.msra.mxu0 0.0
    %202 = vmatprep.subr.mxu0 0.0
    %203 = vmatpush1.xpose.msra.mxu0 0.0
    %204 = vmatprep.mubr.f32.mxu0 %v77
    %205 = vmatmul.mubr.f32.gmra.mrb[0].mxu0 %v76
    %v206 = vpop.f32.mrb[0].mxu0
    %v207 = vadd.f32 0.0, %v206
    %v208 = vpop.f32.mrb[0].mxu0
    %209 = vmatprep.mubr.f32.mxu0 %v79
    %210 = vmatmul.mubr.f32.gmra.mrb[0].mxu0 %v78
    %v211 = vpop.f32.mrb[0].mxu0
    %v212 = vadd.f32 0.0, %v211
    %v213 = vpop.f32.mrb[0].mxu0
    %214 = vmatprep.mubr.f32.mxu0 %v81
    %215 = vmatmul.mubr.f32.gmra.mrb[0].mxu0 %v80
    %v216 = vpop.f32.mrb[0].mxu0
    %v217 = vadd.f32 0.0, %v216
    %v218 = vpop.f32.mrb[0].mxu0
    %219 = vmatprep.mubr.f32.mxu0 %v83
    %220 = vmatmul.mubr.f32.gmra.mrb[0].mxu0 %v82
    %v221 = vpop.f32.mrb[0].mxu0
    %v222 = vadd.f32 0.0, %v221
    %v223 = vpop.f32.mrb[0].mxu0
    %224 = vmatprep.mubr.f32.mxu0 %v85
    %225 = vmatmul.mubr.f32.gmra.mrb[0].mxu0 %v84
    %v226 = vpop.f32.mrb[0].mxu0
    %v227 = vadd.f32 0.0, %v226
    %v228 = vpop.f32.mrb[0].mxu0
    %229 = vmatprep.mubr.f32.mxu0 %v87
    %230 = vmatmul.mubr.f32.gmra.mrb[0].mxu0 %v86
    %v231 = vpop.f32.mrb[0].mxu0
    %v232 = vadd.f32 0.0, %v231
    %v233 = vpop.f32.mrb[0].mxu0
    %234 = vmatprep.mubr.f32.mxu0 %v89
    %235 = vmatmul.mubr.f32.gmra.mrb[0].mxu0 %v88
    %v236 = vpop.f32.mrb[0].mxu0
    %v237 = vadd.f32 0.0, %v236
    %v238 = vpop.f32.mrb[0].mxu0
    %239 = vmatprep.mubr.f32.mxu0 %v91
    %240 = vmatmul.mubr.f32.gmra.mrb[0].mxu0 %v90
    %v241 = vpop.f32.mrb[0].mxu0
    %v242 = vadd.f32 0.0, %v241
    %v243 = vpop.f32.mrb[0].mxu0
    %244 = vmatprep.mubr.f32.mxu0 %v93
    %245 = vmatmul.mubr.f32.gmra.mrb[0].mxu0 %v92
    %v246 = vpop.f32.mrb[0].mxu0
    %v247 = vadd.f32 0.0, %v246
    %v248 = vpop.f32.mrb[0].mxu0
    %249 = vmatprep.mubr.f32.mxu0 %v95
    %250 = vmatmul.mubr.f32.gmra.mrb[0].mxu0 %v94
    %v251 = vpop.f32.mrb[0].mxu0
    %v252 = vadd.f32 0.0, %v251
    %v253 = vpop.f32.mrb[0].mxu0
    %254 = vmatprep.mubr.f32.mxu0 %v97
    %255 = vmatmul.mubr.f32.gmra.mrb[0].mxu0 %v96
    %v256 = vpop.f32.mrb[0].mxu0
    %v257 = vadd.f32 0.0, %v256
    %v258 = vpop.f32.mrb[0].mxu0
    %259 = vmatprep.mubr.f32.mxu0 %v99
    %260 = vmatmul.mubr.f32.gmra.mrb[0].mxu0 %v98
    %v261 = vpop.f32.mrb[0].mxu0
    %v262 = vadd.f32 0.0, %v261
    %v263 = vpop.f32.mrb[0].mxu0
    %264 = vmatprep.mubr.f32.mxu0 %v101
    %265 = vmatmul.mubr.f32.gmra.mrb[0].mxu0 %v100
    %v266 = vpop.f32.mrb[0].mxu0
    %v267 = vadd.f32 0.0, %v266
    %v268 = vpop.f32.mrb[0].mxu0
    %269 = vmatprep.mubr.f32.mxu0 %v103
    %270 = vmatmul.mubr.f32.gmra.mrb[0].mxu0 %v102
    %v271 = vpop.f32.mrb[0].mxu0
    %v272 = vadd.f32 0.0, %v271
    %v273 = vpop.f32.mrb[0].mxu0
    %274 = vmatprep.mubr.f32.mxu0 %v105
    %275 = vmatmul.mubr.f32.gmra.mrb[0].mxu0 %v104
    %v276 = vpop.f32.mrb[0].mxu0
    %v277 = vadd.f32 0.0, %v276
    %v278 = vpop.f32.mrb[0].mxu0
    %279 = vmatprep.mubr.f32.mxu0 %v107
    %280 = vmatmul.mubr.f32.gmra.mrb[0].mxu0 %v106
    %v281 = vpop.f32.mrb[0].mxu0
    %v282 = vadd.f32 0.0, %v281
    %v283 = vpop.f32.mrb[0].mxu0
    %284 = vmatprep.mubr.f32.mxu0 %v109
    %285 = vmatmul.mubr.f32.gmra.mrb[0].mxu0 %v108
    %v286 = vpop.f32.mrb[0].mxu0
    %v287 = vadd.f32 0.0, %v286
    %v288 = vpop.f32.mrb[0].mxu0
    %289 = vmatprep.mubr.f32.mxu0 %v111
    %290 = vmatmul.mubr.f32.gmra.mrb[0].mxu0 %v110
    %v291 = vpop.f32.mrb[0].mxu0
    %v292 = vadd.f32 0.0, %v291
    %v293 = vpop.f32.mrb[0].mxu0
    %294 = vmatprep.mubr.f32.mxu0 %v113
    %295 = vmatmul.mubr.f32.gmra.mrb[0].mxu0 %v112
    %v296 = vpop.f32.mrb[0].mxu0
    %v297 = vadd.f32 0.0, %v296
    %v298 = vpop.f32.mrb[0].mxu0
    %299 = vmatprep.mubr.f32.mxu0 %v115
    %300 = vmatmul.mubr.f32.gmra.mrb[0].mxu0 %v114
    %v301 = vpop.f32.mrb[0].mxu0
    %v302 = vadd.f32 0.0, %v301
    %v303 = vpop.f32.mrb[0].mxu0
    %304 = vmatprep.mubr.f32.mxu0 %v117
    %305 = vmatmul.mubr.f32.gmra.mrb[0].mxu0 %v116
    %v306 = vpop.f32.mrb[0].mxu0
    %v307 = vadd.f32 0.0, %v306
    %v308 = vpop.f32.mrb[0].mxu0
    %309 = vmatprep.mubr.f32.mxu0 %v119
    %310 = vmatmul.mubr.f32.gmra.mrb[0].mxu0 %v118
    %v311 = vpop.f32.mrb[0].mxu0
    %v312 = vadd.f32 0.0, %v311
    %v313 = vpop.f32.mrb[0].mxu0
    %314 = vmatprep.mubr.f32.mxu0 %v121
    %315 = vmatmul.mubr.f32.gmra.mrb[0].mxu0 %v120
    %v316 = vpop.f32.mrb[0].mxu0
    %v317 = vadd.f32 0.0, %v316
    %v318 = vpop.f32.mrb[0].mxu0
    %319 = vmatprep.mubr.f32.mxu0 %v123
    %320 = vmatmul.mubr.f32.gmra.mrb[0].mxu0 %v122
    %v321 = vpop.f32.mrb[0].mxu0
    %v322 = vadd.f32 0.0, %v321
    %v323 = vpop.f32.mrb[0].mxu0
    %324 = vmatprep.mubr.f32.mxu0 %v125
    %325 = vmatmul.mubr.f32.gmra.mrb[0].mxu0 %v124
    %v326 = vpop.f32.mrb[0].mxu0
    %v327 = vadd.f32 0.0, %v326
    %v328 = vpop.f32.mrb[0].mxu0
    %329 = vmatprep.mubr.f32.mxu0 %v127
    %330 = vmatmul.mubr.f32.gmra.mrb[0].mxu0 %v126
    %v331 = vpop.f32.mrb[0].mxu0
    %v332 = vadd.f32 0.0, %v331
    %v333 = vpop.f32.mrb[0].mxu0
    %334 = vmatprep.mubr.f32.mxu0 %v129
    %335 = vmatmul.mubr.f32.gmra.mrb[0].mxu0 %v128
    %v336 = vpop.f32.mrb[0].mxu0
    %v337 = vadd.f32 0.0, %v336
    %v338 = vpop.f32.mrb[0].mxu0
    %339 = vmatprep.mubr.f32.mxu0 %v131
    %340 = vmatmul.mubr.f32.gmra.mrb[0].mxu0 %v130
    %v341 = vpop.f32.mrb[0].mxu0
    %v342 = vadd.f32 0.0, %v341
    %v343 = vpop.f32.mrb[0].mxu0
    %344 = vmatprep.mubr.f32.mxu0 %v133
    %345 = vmatmul.mubr.f32.gmra.mrb[0].mxu0 %v132
    %v346 = vpop.f32.mrb[0].mxu0
    %v347 = vadd.f32 0.0, %v346
    %v348 = vpop.f32.mrb[0].mxu0
    %349 = vmatprep.mubr.f32.mxu0 %v135
    %350 = vmatmul.mubr.f32.gmra.mrb[0].mxu0 %v134
    %v351 = vpop.f32.mrb[0].mxu0
    %v352 = vadd.f32 0.0, %v351
    %v353 = vpop.f32.mrb[0].mxu0
    %354 = vmatprep.mubr.f32.mxu0 %v137
    %355 = vmatmul.mubr.f32.gmra.mrb[0].mxu0 %v136
    %v356 = vpop.f32.mrb[0].mxu0
    %v357 = vadd.f32 0.0, %v356
    %v358 = vpop.f32.mrb[0].mxu0
    %359 = vmatprep.mubr.f32.mxu0 %v139
    %360 = vmatmul.mubr.f32.gmra.mrb[0].mxu0 %v138
    %v361 = vpop.f32.mrb[0].mxu0
    %v362 = vadd.f32 0.0, %v361
    %v363 = vpop.f32.mrb[0].mxu0
    %364 = vdwg.mxu0
    %v365 = vld [vmem:[#allocation8] sm:$0xff]
    %v366 = vld [vmem:[#allocation8 + $0x8] sm:$0xff]
    %v367 = vld [vmem:[#allocation8 + $0x10] sm:$0xff]
    %v368 = vld [vmem:[#allocation8 + $0x18] sm:$0xff]
    %v369 = vld [vmem:[#allocation8 + $0x20] sm:$0xff]
    %v370 = vld [vmem:[#allocation8 + $0x28] sm:$0xff]
    %v371 = vld [vmem:[#allocation8 + $0x30] sm:$0xff]
    %v372 = vld [vmem:[#allocation8 + $0x38] sm:$0xff]
    %v373 = vld [vmem:[#allocation8 + $0x40] sm:$0xff]
    %v374 = vld [vmem:[#allocation8 + $0x48] sm:$0xff]
    %v375 = vld [vmem:[#allocation8 + $0x50] sm:$0xff]
    %v376 = vld [vmem:[#allocation8 + $0x58] sm:$0xff]
    %v377 = vld [vmem:[#allocation8 + $0x60] sm:$0xff]
    %v378 = vld [vmem:[#allocation8 + $0x68] sm:$0xff]
    %v379 = vld [vmem:[#allocation8 + $0x70] sm:$0xff]
    %v380 = vld [vmem:[#allocation8 + $0x78] sm:$0xff]
    %v381 = vld [vmem:[#allocation8 + $0x80] sm:$0xff]
    %v382 = vld [vmem:[#allocation8 + $0x88] sm:$0xff]
    %v383 = vld [vmem:[#allocation8 + $0x90] sm:$0xff]
    %v384 = vld [vmem:[#allocation8 + $0x98] sm:$0xff]
    %v385 = vld [vmem:[#allocation8 + $0xa0] sm:$0xff]
    %v386 = vld [vmem:[#allocation8 + $0xa8] sm:$0xff]
    %v387 = vld [vmem:[#allocation8 + $0xb0] sm:$0xff]
    %v388 = vld [vmem:[#allocation8 + $0xb8] sm:$0xff]
    %v389 = vld [vmem:[#allocation8 + $0xc0] sm:$0xff]
    %v390 = vld [vmem:[#allocation8 + $0xc8] sm:$0xff]
    %v391 = vld [vmem:[#allocation8 + $0xd0] sm:$0xff]
    %v392 = vld [vmem:[#allocation8 + $0xd8] sm:$0xff]
    %v393 = vld [vmem:[#allocation8 + $0xe0] sm:$0xff]
    %v394 = vld [vmem:[#allocation8 + $0xe8] sm:$0xff]
    %v395 = vld [vmem:[#allocation8 + $0xf0] sm:$0xff]
    %v396 = vld [vmem:[#allocation8 + $0xf8] sm:$0xff]
    %v397 = vld [vmem:[#allocation8 + $0x100] sm:$0xff]
    %v398 = vld [vmem:[#allocation8 + $0x108] sm:$0xff]
    %v399 = vld [vmem:[#allocation8 + $0x110] sm:$0xff]
    %v400 = vld [vmem:[#allocation8 + $0x118] sm:$0xff]
    %v401 = vld [vmem:[#allocation8 + $0x120] sm:$0xff]
    %v402 = vld [vmem:[#allocation8 + $0x128] sm:$0xff]
    %v403 = vld [vmem:[#allocation8 + $0x130] sm:$0xff]
    %v404 = vld [vmem:[#allocation8 + $0x138] sm:$0xff]
    %v405 = vld [vmem:[#allocation8 + $0x140] sm:$0xff]
    %v406 = vld [vmem:[#allocation8 + $0x148] sm:$0xff]
    %v407 = vld [vmem:[#allocation8 + $0x150] sm:$0xff]
    %v408 = vld [vmem:[#allocation8 + $0x158] sm:$0xff]
    %v409 = vld [vmem:[#allocation8 + $0x160] sm:$0xff]
    %v410 = vld [vmem:[#allocation8 + $0x168] sm:$0xff]
    %v411 = vld [vmem:[#allocation8 + $0x170] sm:$0xff]
    %v412 = vld [vmem:[#allocation8 + $0x178] sm:$0xff]
    %v413 = vld [vmem:[#allocation8 + $0x180] sm:$0xff]
    %v414 = vld [vmem:[#allocation8 + $0x188] sm:$0xff]
    %v415 = vld [vmem:[#allocation8 + $0x190] sm:$0xff]
    %v416 = vld [vmem:[#allocation8 + $0x198] sm:$0xff]
    %v417 = vld [vmem:[#allocation8 + $0x1a0] sm:$0xff]
    %v418 = vld [vmem:[#allocation8 + $0x1a8] sm:$0xff]
    %v419 = vld [vmem:[#allocation8 + $0x1b0] sm:$0xff]
    %v420 = vld [vmem:[#allocation8 + $0x1b8] sm:$0xff]
    %v421 = vld [vmem:[#allocation8 + $0x1c0] sm:$0xff]
    %v422 = vld [vmem:[#allocation8 + $0x1c8] sm:$0xff]
    %v423 = vld [vmem:[#allocation8 + $0x1d0] sm:$0xff]
    %v424 = vld [vmem:[#allocation8 + $0x1d8] sm:$0xff]
    %v425 = vld [vmem:[#allocation8 + $0x1e0] sm:$0xff]
    %v426 = vld [vmem:[#allocation8 + $0x1e8] sm:$0xff]
    %v427 = vld [vmem:[#allocation8 + $0x1f0] sm:$0xff]
    %v428 = vld [vmem:[#allocation8 + $0x1f8] sm:$0xff]
    %429 = vmatprep.subr.mxu0 %v73
    %430 = vmatpush1.xpose.msra.mxu0 %v72
    %431 = vmatprep.subr.mxu0 0.0
    %432 = vmatpush1.xpose.msra.mxu0 0.0
    %433 = vmatprep.subr.mxu0 0.0
    %434 = vmatpush1.xpose.msra.mxu0 0.0
    %435 = vmatprep.subr.mxu0 0.0
    %436 = vmatpush1.xpose.msra.mxu0 0.0
    %437 = vmatprep.subr.mxu0 0.0
    %438 = vmatpush1.xpose.msra.mxu0 0.0
    %439 = vmatprep.subr.mxu0 0.0
    %440 = vmatpush1.xpose.msra.mxu0 0.0
    %441 = vmatprep.subr.mxu0 0.0
    %442 = vmatpush1.xpose.msra.mxu0 0.0
    %443 = vmatprep.subr.mxu0 0.0
    %444 = vmatpush1.xpose.msra.mxu0 0.0
    %445 = vmatprep.subr.mxu0 0.0
    %446 = vmatpush1.xpose.msra.mxu0 0.0
    %447 = vmatprep.subr.mxu0 0.0
    %448 = vmatpush1.xpose.msra.mxu0 0.0
    %449 = vmatprep.subr.mxu0 0.0
    %450 = vmatpush1.xpose.msra.mxu0 0.0
    %451 = vmatprep.subr.mxu0 0.0
    %452 = vmatpush1.xpose.msra.mxu0 0.0
    %453 = vmatprep.subr.mxu0 0.0
    %454 = vmatpush1.xpose.msra.mxu0 0.0
    %455 = vmatprep.subr.mxu0 0.0
    %456 = vmatpush1.xpose.msra.mxu0 0.0
    %457 = vmatprep.subr.mxu0 0.0
    %458 = vmatpush1.xpose.msra.mxu0 0.0
    %459 = vmatprep.subr.mxu0 0.0
    %460 = vmatpush1.xpose.msra.mxu0 0.0
    %461 = vmatprep.subr.mxu0 0.0
    %462 = vmatpush1.xpose.msra.mxu0 0.0
    %463 = vmatprep.subr.mxu0 0.0
    %464 = vmatpush1.xpose.msra.mxu0 0.0
    %465 = vmatprep.subr.mxu0 0.0
    %466 = vmatpush1.xpose.msra.mxu0 0.0
    %467 = vmatprep.subr.mxu0 0.0
    %468 = vmatpush1.xpose.msra.mxu0 0.0
    %469 = vmatprep.subr.mxu0 0.0
    %470 = vmatpush1.xpose.msra.mxu0 0.0
    %471 = vmatprep.subr.mxu0 0.0
    %472 = vmatpush1.xpose.msra.mxu0 0.0
    %473 = vmatprep.subr.mxu0 0.0
    %474 = vmatpush1.xpose.msra.mxu0 0.0
    %475 = vmatprep.subr.mxu0 0.0
    %476 = vmatpush1.xpose.msra.mxu0 0.0
    %477 = vmatprep.subr.mxu0 0.0
    %478 = vmatpush1.xpose.msra.mxu0 0.0
    %479 = vmatprep.subr.mxu0 0.0
    %480 = vmatpush1.xpose.msra.mxu0 0.0
    %481 = vmatprep.subr.mxu0 0.0
    %482 = vmatpush1.xpose.msra.mxu0 0.0
    %483 = vmatprep.subr.mxu0 0.0
    %484 = vmatpush1.xpose.msra.mxu0 0.0
    %485 = vmatprep.subr.mxu0 0.0
    %486 = vmatpush1.xpose.msra.mxu0 0.0
    %487 = vmatprep.subr.mxu0 0.0
    %488 = vmatpush1.xpose.msra.mxu0 0.0
    %489 = vmatprep.subr.mxu0 0.0
    %490 = vmatpush1.xpose.msra.mxu0 0.0
    %491 = vmatprep.subr.mxu0 0.0
    %492 = vmatpush1.xpose.msra.mxu0 0.0
    %493 = vmatprep.mubr.f32.mxu0 %v366
    %494 = vmatmul.mubr.f32.gmra.mrb[0].mxu0 %v365
    %v495 = vpop.f32.mrb[0].mxu0
    %v496 = vadd.f32 0.0, %v495
    %v497 = vpop.f32.mrb[0].mxu0
    %498 = vmatprep.mubr.f32.mxu0 %v368
    %499 = vmatmul.mubr.f32.gmra.mrb[0].mxu0 %v367
    %v500 = vpop.f32.mrb[0].mxu0
    %v501 = vadd.f32 0.0, %v500
    %v502 = vpop.f32.mrb[0].mxu0
    %503 = vmatprep.mubr.f32.mxu0 %v370
    %504 = vmatmul.mubr.f32.gmra.mrb[0].mxu0 %v369
    %v505 = vpop.f32.mrb[0].mxu0
    %v506 = vadd.f32 0.0, %v505
    %v507 = vpop.f32.mrb[0].mxu0
    %508 = vmatprep.mubr.f32.mxu0 %v372
    %509 = vmatmul.mubr.f32.gmra.mrb[0].mxu0 %v371
    %v510 = vpop.f32.mrb[0].mxu0
    %v511 = vadd.f32 0.0, %v510
    %v512 = vpop.f32.mrb[0].mxu0
    %513 = vmatprep.mubr.f32.mxu0 %v374
    %514 = vmatmul.mubr.f32.gmra.mrb[0].mxu0 %v373
    %v515 = vpop.f32.mrb[0].mxu0
    %v516 = vadd.f32 0.0, %v515
    %v517 = vpop.f32.mrb[0].mxu0
    %518 = vmatprep.mubr.f32.mxu0 %v376
    %519 = vmatmul.mubr.f32.gmra.mrb[0].mxu0 %v375
    %v520 = vpop.f32.mrb[0].mxu0
    %v521 = vadd.f32 0.0, %v520
    %v522 = vpop.f32.mrb[0].mxu0
    %523 = vmatprep.mubr.f32.mxu0 %v378
    %524 = vmatmul.mubr.f32.gmra.mrb[0].mxu0 %v377
    %v525 = vpop.f32.mrb[0].mxu0
    %v526 = vadd.f32 0.0, %v525
    %v527 = vpop.f32.mrb[0].mxu0
    %528 = vmatprep.mubr.f32.mxu0 %v380
    %529 = vmatmul.mubr.f32.gmra.mrb[0].mxu0 %v379
    %v530 = vpop.f32.mrb[0].mxu0
    %v531 = vadd.f32 0.0, %v530
    %v532 = vpop.f32.mrb[0].mxu0
    %533 = vmatprep.mubr.f32.mxu0 %v382
    %534 = vmatmul.mubr.f32.gmra.mrb[0].mxu0 %v381
    %v535 = vpop.f32.mrb[0].mxu0
    %v536 = vadd.f32 0.0, %v535
    %v537 = vpop.f32.mrb[0].mxu0
    %538 = vmatprep.mubr.f32.mxu0 %v384
    %539 = vmatmul.mubr.f32.gmra.mrb[0].mxu0 %v383
    %v540 = vpop.f32.mrb[0].mxu0
    %v541 = vadd.f32 0.0, %v540
    %v542 = vpop.f32.mrb[0].mxu0
    %543 = vmatprep.mubr.f32.mxu0 %v386
    %544 = vmatmul.mubr.f32.gmra.mrb[0].mxu0 %v385
    %v545 = vpop.f32.mrb[0].mxu0
    %v546 = vadd.f32 0.0, %v545
    %v547 = vpop.f32.mrb[0].mxu0
    %548 = vmatprep.mubr.f32.mxu0 %v388
    %549 = vmatmul.mubr.f32.gmra.mrb[0].mxu0 %v387
    %v550 = vpop.f32.mrb[0].mxu0
    %v551 = vadd.f32 0.0, %v550
    %v552 = vpop.f32.mrb[0].mxu0
    %553 = vmatprep.mubr.f32.mxu0 %v390
    %554 = vmatmul.mubr.f32.gmra.mrb[0].mxu0 %v389
    %v555 = vpop.f32.mrb[0].mxu0
    %v556 = vadd.f32 0.0, %v555
    %v557 = vpop.f32.mrb[0].mxu0
    %558 = vmatprep.mubr.f32.mxu0 %v392
    %559 = vmatmul.mubr.f32.gmra.mrb[0].mxu0 %v391
    %v560 = vpop.f32.mrb[0].mxu0
    %v561 = vadd.f32 0.0, %v560
    %v562 = vpop.f32.mrb[0].mxu0
    %563 = vmatprep.mubr.f32.mxu0 %v394
    %564 = vmatmul.mubr.f32.gmra.mrb[0].mxu0 %v393
    %v565 = vpop.f32.mrb[0].mxu0
    %v566 = vadd.f32 0.0, %v565
    %v567 = vpop.f32.mrb[0].mxu0
    %568 = vmatprep.mubr.f32.mxu0 %v396
    %569 = vmatmul.mubr.f32.gmra.mrb[0].mxu0 %v395
    %v570 = vpop.f32.mrb[0].mxu0
    %v571 = vadd.f32 0.0, %v570
    %v572 = vpop.f32.mrb[0].mxu0
    %573 = vmatprep.mubr.f32.mxu0 %v398
    %574 = vmatmul.mubr.f32.gmra.mrb[0].mxu0 %v397
    %v575 = vpop.f32.mrb[0].mxu0
    %v576 = vadd.f32 0.0, %v575
    %v577 = vpop.f32.mrb[0].mxu0
    %578 = vmatprep.mubr.f32.mxu0 %v400
    %579 = vmatmul.mubr.f32.gmra.mrb[0].mxu0 %v399
    %v580 = vpop.f32.mrb[0].mxu0
    %v581 = vadd.f32 0.0, %v580
    %v582 = vpop.f32.mrb[0].mxu0
    %583 = vmatprep.mubr.f32.mxu0 %v402
    %584 = vmatmul.mubr.f32.gmra.mrb[0].mxu0 %v401
    %v585 = vpop.f32.mrb[0].mxu0
    %v586 = vadd.f32 0.0, %v585
    %v587 = vpop.f32.mrb[0].mxu0
    %588 = vmatprep.mubr.f32.mxu0 %v404
    %589 = vmatmul.mubr.f32.gmra.mrb[0].mxu0 %v403
    %v590 = vpop.f32.mrb[0].mxu0
    %v591 = vadd.f32 0.0, %v590
    %v592 = vpop.f32.mrb[0].mxu0
    %593 = vmatprep.mubr.f32.mxu0 %v406
    %594 = vmatmul.mubr.f32.gmra.mrb[0].mxu0 %v405
    %v595 = vpop.f32.mrb[0].mxu0
    %v596 = vadd.f32 0.0, %v595
    %v597 = vpop.f32.mrb[0].mxu0
    %598 = vmatprep.mubr.f32.mxu0 %v408
    %599 = vmatmul.mubr.f32.gmra.mrb[0].mxu0 %v407
    %v600 = vpop.f32.mrb[0].mxu0
    %v601 = vadd.f32 0.0, %v600
    %v602 = vpop.f32.mrb[0].mxu0
    %603 = vmatprep.mubr.f32.mxu0 %v410
    %604 = vmatmul.mubr.f32.gmra.mrb[0].mxu0 %v409
    %v605 = vpop.f32.mrb[0].mxu0
    %v606 = vadd.f32 0.0, %v605
    %v607 = vpop.f32.mrb[0].mxu0
    %608 = vmatprep.mubr.f32.mxu0 %v412
    %609 = vmatmul.mubr.f32.gmra.mrb[0].mxu0 %v411
    %v610 = vpop.f32.mrb[0].mxu0
    %v611 = vadd.f32 0.0, %v610
    %v612 = vpop.f32.mrb[0].mxu0
    %613 = vmatprep.mubr.f32.mxu0 %v414
    %614 = vmatmul.mubr.f32.gmra.mrb[0].mxu0 %v413
    %v615 = vpop.f32.mrb[0].mxu0
    %v616 = vadd.f32 0.0, %v615
    %v617 = vpop.f32.mrb[0].mxu0
    %618 = vmatprep.mubr.f32.mxu0 %v416
    %619 = vmatmul.mubr.f32.gmra.mrb[0].mxu0 %v415
    %v620 = vpop.f32.mrb[0].mxu0
    %v621 = vadd.f32 0.0, %v620
    %v622 = vpop.f32.mrb[0].mxu0
    %623 = vmatprep.mubr.f32.mxu0 %v418
    %624 = vmatmul.mubr.f32.gmra.mrb[0].mxu0 %v417
    %v625 = vpop.f32.mrb[0].mxu0
    %v626 = vadd.f32 0.0, %v625
    %v627 = vpop.f32.mrb[0].mxu0
    %628 = vmatprep.mubr.f32.mxu0 %v420
    %629 = vmatmul.mubr.f32.gmra.mrb[0].mxu0 %v419
    %v630 = vpop.f32.mrb[0].mxu0
    %v631 = vadd.f32 0.0, %v630
    %v632 = vpop.f32.mrb[0].mxu0
    %633 = vmatprep.mubr.f32.mxu0 %v422
    %634 = vmatmul.mubr.f32.gmra.mrb[0].mxu0 %v421
    %v635 = vpop.f32.mrb[0].mxu0
    %v636 = vadd.f32 0.0, %v635
    %v637 = vpop.f32.mrb[0].mxu0
    %638 = vmatprep.mubr.f32.mxu0 %v424
    %639 = vmatmul.mubr.f32.gmra.mrb[0].mxu0 %v423
    %v640 = vpop.f32.mrb[0].mxu0
    %v641 = vadd.f32 0.0, %v640
    %v642 = vpop.f32.mrb[0].mxu0
    %643 = vmatprep.mubr.f32.mxu0 %v426
    %644 = vmatmul.mubr.f32.gmra.mrb[0].mxu0 %v425
    %v645 = vpop.f32.mrb[0].mxu0
    %v646 = vadd.f32 0.0, %v645
    %v647 = vpop.f32.mrb[0].mxu0
    %648 = vmatprep.mubr.f32.mxu0 %v428
    %649 = vmatmul.mubr.f32.gmra.mrb[0].mxu0 %v427
    %v650 = vpop.f32.mrb[0].mxu0
    %v651 = vadd.f32 0.0, %v650
    %v652 = vpop.f32.mrb[0].mxu0
    %653 = vdwg.mxu0
    %vm654 = vcmask 31744
    %v656 = vsel %vm654, %v207, 0
    %v659 = vsel %vm654, %v212, 0
    %v662 = vsel %vm654, %v217, 0
    %v665 = vsel %vm654, %v222, 0
    %v668 = vsel %vm654, %v227, 0
    %v671 = vsel %vm654, %v232, 0
    %v674 = vsel %vm654, %v237, 0
    %v677 = vsel %vm654, %v242, 0
    %v680 = vsel %vm654, %v247, 0
    %v683 = vsel %vm654, %v252, 0
    %v686 = vsel %vm654, %v257, 0
    %v689 = vsel %vm654, %v262, 0
    %v692 = vsel %vm654, %v267, 0
    %v695 = vsel %vm654, %v272, 0
    %v698 = vsel %vm654, %v277, 0
    %v701 = vsel %vm654, %v282, 0
    %v704 = vsel %vm654, %v287, 0
    %v707 = vsel %vm654, %v292, 0
    %v710 = vsel %vm654, %v297, 0
    %v713 = vsel %vm654, %v302, 0
    %v716 = vsel %vm654, %v307, 0
    %v719 = vsel %vm654, %v312, 0
    %v722 = vsel %vm654, %v317, 0
    %v725 = vsel %vm654, %v322, 0
    %v728 = vsel %vm654, %v327, 0
    %v731 = vsel %vm654, %v332, 0
    %v734 = vsel %vm654, %v337, 0
    %v737 = vsel %vm654, %v342, 0
    %v740 = vsel %vm654, %v347, 0
    %v743 = vsel %vm654, %v352, 0
    %v746 = vsel %vm654, %v357, 0
    %v749 = vsel %vm654, %v362, 0
    %v752 = vsel %vm654, %v496, 0
    %v755 = vsel %vm654, %v501, 0
    %v758 = vsel %vm654, %v506, 0
    %v761 = vsel %vm654, %v511, 0
    %v764 = vsel %vm654, %v516, 0
    %v767 = vsel %vm654, %v521, 0
    %v770 = vsel %vm654, %v526, 0
    %v773 = vsel %vm654, %v531, 0
    %v776 = vsel %vm654, %v536, 0
    %v779 = vsel %vm654, %v541, 0
    %v782 = vsel %vm654, %v546, 0
    %v785 = vsel %vm654, %v551, 0
    %v788 = vsel %vm654, %v556, 0
    %v791 = vsel %vm654, %v561, 0
    %v794 = vsel %vm654, %v566, 0
    %v797 = vsel %vm654, %v571, 0
    %v800 = vsel %vm654, %v576, 0
    %v803 = vsel %vm654, %v581, 0
    %v806 = vsel %vm654, %v586, 0
    %v809 = vsel %vm654, %v591, 0
    %v812 = vsel %vm654, %v596, 0
    %v815 = vsel %vm654, %v601, 0
    %v818 = vsel %vm654, %v606, 0
    %v821 = vsel %vm654, %v611, 0
    %v824 = vsel %vm654, %v616, 0
    %v827 = vsel %vm654, %v621, 0
    %v830 = vsel %vm654, %v626, 0
    %v833 = vsel %vm654, %v631, 0
    %v836 = vsel %vm654, %v636, 0
    %v839 = vsel %vm654, %v641, 0
    %v842 = vsel %vm654, %v646, 0
    %v845 = vsel %vm654, %v651, 0
    %847 = vmatprep.subr.mxu0 0.0
    %848 = vmatpush1.xpose.msra.mxu0 %v752
    %849 = vmatprep.subr.mxu0 0.0
    %850 = vmatpush1.xpose.msra.mxu0 %v755
    %851 = vmatprep.subr.mxu0 0.0
    %852 = vmatpush1.xpose.msra.mxu0 %v758
    %853 = vmatprep.subr.mxu0 0.0
    %854 = vmatpush1.xpose.msra.mxu0 %v761
    %855 = vmatprep.subr.mxu0 0.0
    %856 = vmatpush1.xpose.msra.mxu0 %v764
    %857 = vmatprep.subr.mxu0 0.0
    %858 = vmatpush1.xpose.msra.mxu0 %v767
    %859 = vmatprep.subr.mxu0 0.0
    %860 = vmatpush1.xpose.msra.mxu0 %v770
    %861 = vmatprep.subr.mxu0 0.0
    %862 = vmatpush1.xpose.msra.mxu0 %v773
    %863 = vmatprep.subr.mxu0 0.0
    %864 = vmatpush1.xpose.msra.mxu0 %v776
    %865 = vmatprep.subr.mxu0 0.0
    %866 = vmatpush1.xpose.msra.mxu0 %v779
    %867 = vmatprep.subr.mxu0 0.0
    %868 = vmatpush1.xpose.msra.mxu0 %v782
    %869 = vmatprep.subr.mxu0 0.0
    %870 = vmatpush1.xpose.msra.mxu0 %v785
    %871 = vmatprep.subr.mxu0 0.0
    %872 = vmatpush1.xpose.msra.mxu0 %v788
    %873 = vmatprep.subr.mxu0 0.0
    %874 = vmatpush1.xpose.msra.mxu0 %v791
    %875 = vmatprep.subr.mxu0 0.0
    %876 = vmatpush1.xpose.msra.mxu0 %v794
    %877 = vmatprep.subr.mxu0 0.0
    %878 = vmatpush1.xpose.msra.mxu0 %v797
    %879 = vmatprep.subr.mxu0 0.0
    %880 = vmatpush1.xpose.msra.mxu0 %v800
    %881 = vmatprep.subr.mxu0 0.0
    %882 = vmatpush1.xpose.msra.mxu0 %v803
    %883 = vmatprep.subr.mxu0 0.0
    %884 = vmatpush1.xpose.msra.mxu0 %v806
    %885 = vmatprep.subr.mxu0 0.0
    %886 = vmatpush1.xpose.msra.mxu0 %v809
    %887 = vmatprep.subr.mxu0 0.0
    %888 = vmatpush1.xpose.msra.mxu0 %v812
    %889 = vmatprep.subr.mxu0 0.0
    %890 = vmatpush1.xpose.msra.mxu0 %v815
    %891 = vmatprep.subr.mxu0 0.0
    %892 = vmatpush1.xpose.msra.mxu0 %v818
    %893 = vmatprep.subr.mxu0 0.0
    %894 = vmatpush1.xpose.msra.mxu0 %v821
    %895 = vmatprep.subr.mxu0 0.0
    %896 = vmatpush1.xpose.msra.mxu0 %v824
    %897 = vmatprep.subr.mxu0 0.0
    %898 = vmatpush1.xpose.msra.mxu0 %v827
    %899 = vmatprep.subr.mxu0 0.0
    %900 = vmatpush1.xpose.msra.mxu0 %v830
    %901 = vmatprep.subr.mxu0 0.0
    %902 = vmatpush1.xpose.msra.mxu0 %v833
    %903 = vmatprep.subr.mxu0 0.0
    %904 = vmatpush1.xpose.msra.mxu0 %v836
    %905 = vmatprep.subr.mxu0 0.0
    %906 = vmatpush1.xpose.msra.mxu0 %v839
    %907 = vmatprep.subr.mxu0 0.0
    %908 = vmatpush1.xpose.msra.mxu0 %v842
    %909 = vmatprep.subr.mxu0 0.0
    %910 = vmatpush1.xpose.msra.mxu0 %v845
    %911 = vmatprep.mubr.f32.mxu0 0.0
    %912 = vmatmul.mubr.f32.gmra.mrb[0].mxu0 %v656
    %v913 = vpop.f32.mrb[0].mxu0
    %v914 = vadd.f32 0.0, %v913
    %v915 = vpop.f32.mrb[0].mxu0
    %v916 = vadd.f32 0.0, %v915
    %917 = vmatprep.mubr.f32.mxu0 0.0
    %918 = vmatmul.mubr.f32.gmra.mrb[0].mxu0 %v659
    %v919 = vpop.f32.mrb[0].mxu0
    %v920 = vadd.f32 0.0, %v919
    %v921 = vpop.f32.mrb[0].mxu0
    %v922 = vadd.f32 0.0, %v921
    %923 = vmatprep.mubr.f32.mxu0 0.0
    %924 = vmatmul.mubr.f32.gmra.mrb[0].mxu0 %v662
    %v925 = vpop.f32.mrb[0].mxu0
    %v926 = vadd.f32 0.0, %v925
    %v927 = vpop.f32.mrb[0].mxu0
    %v928 = vadd.f32 0.0, %v927
    %929 = vmatprep.mubr.f32.mxu0 0.0
    %930 = vmatmul.mubr.f32.gmra.mrb[0].mxu0 %v665
    %v931 = vpop.f32.mrb[0].mxu0
    %v932 = vadd.f32 0.0, %v931
    %v933 = vpop.f32.mrb[0].mxu0
    %v934 = vadd.f32 0.0, %v933
    %935 = vmatprep.mubr.f32.mxu0 0.0
    %936 = vmatmul.mubr.f32.gmra.mrb[0].mxu0 %v668
    %v937 = vpop.f32.mrb[0].mxu0
    %v938 = vadd.f32 0.0, %v937
    %v939 = vpop.f32.mrb[0].mxu0
    %v940 = vadd.f32 0.0, %v939
    %941 = vmatprep.mubr.f32.mxu0 0.0
    %942 = vmatmul.mubr.f32.gmra.mrb[0].mxu0 %v671
    %v943 = vpop.f32.mrb[0].mxu0
    %v944 = vadd.f32 0.0, %v943
    %v945 = vpop.f32.mrb[0].mxu0
    %v946 = vadd.f32 0.0, %v945
    %947 = vmatprep.mubr.f32.mxu0 0.0
    %948 = vmatmul.mubr.f32.gmra.mrb[0].mxu0 %v674
    %v949 = vpop.f32.mrb[0].mxu0
    %v950 = vadd.f32 0.0, %v949
    %v951 = vpop.f32.mrb[0].mxu0
    %v952 = vadd.f32 0.0, %v951
    %953 = vmatprep.mubr.f32.mxu0 0.0
    %954 = vmatmul.mubr.f32.gmra.mrb[0].mxu0 %v677
    %v955 = vpop.f32.mrb[0].mxu0
    %v956 = vadd.f32 0.0, %v955
    %v957 = vpop.f32.mrb[0].mxu0
    %v958 = vadd.f32 0.0, %v957
    %959 = vmatprep.mubr.f32.mxu0 0.0
    %960 = vmatmul.mubr.f32.gmra.mrb[0].mxu0 %v680
    %v961 = vpop.f32.mrb[0].mxu0
    %v962 = vadd.f32 0.0, %v961
    %v963 = vpop.f32.mrb[0].mxu0
    %v964 = vadd.f32 0.0, %v963
    %965 = vmatprep.mubr.f32.mxu0 0.0
    %966 = vmatmul.mubr.f32.gmra.mrb[0].mxu0 %v683
    %v967 = vpop.f32.mrb[0].mxu0
    %v968 = vadd.f32 0.0, %v967
    %v969 = vpop.f32.mrb[0].mxu0
    %v970 = vadd.f32 0.0, %v969
    %971 = vmatprep.mubr.f32.mxu0 0.0
    %972 = vmatmul.mubr.f32.gmra.mrb[0].mxu0 %v686
    %v973 = vpop.f32.mrb[0].mxu0
    %v974 = vadd.f32 0.0, %v973
    %v975 = vpop.f32.mrb[0].mxu0
    %v976 = vadd.f32 0.0, %v975
    %977 = vmatprep.mubr.f32.mxu0 0.0
    %978 = vmatmul.mubr.f32.gmra.mrb[0].mxu0 %v689
    %v979 = vpop.f32.mrb[0].mxu0
    %v980 = vadd.f32 0.0, %v979
    %v981 = vpop.f32.mrb[0].mxu0
    %v982 = vadd.f32 0.0, %v981
    %983 = vmatprep.mubr.f32.mxu0 0.0
    %984 = vmatmul.mubr.f32.gmra.mrb[0].mxu0 %v692
    %v985 = vpop.f32.mrb[0].mxu0
    %v986 = vadd.f32 0.0, %v985
    %v987 = vpop.f32.mrb[0].mxu0
    %v988 = vadd.f32 0.0, %v987
    %989 = vmatprep.mubr.f32.mxu0 0.0
    %990 = vmatmul.mubr.f32.gmra.mrb[0].mxu0 %v695
    %v991 = vpop.f32.mrb[0].mxu0
    %v992 = vadd.f32 0.0, %v991
    %v993 = vpop.f32.mrb[0].mxu0
    %v994 = vadd.f32 0.0, %v993
    %995 = vmatprep.mubr.f32.mxu0 0.0
    %996 = vmatmul.mubr.f32.gmra.mrb[0].mxu0 %v698
    %v997 = vpop.f32.mrb[0].mxu0
    %v998 = vadd.f32 0.0, %v997
    %v999 = vpop.f32.mrb[0].mxu0
    %v1000 = vadd.f32 0.0, %v999
    %1001 = vmatprep.mubr.f32.mxu0 0.0
    %1002 = vmatmul.mubr.f32.gmra.mrb[0].mxu0 %v701
    %v1003 = vpop.f32.mrb[0].mxu0
    %v1004 = vadd.f32 0.0, %v1003
    %v1005 = vpop.f32.mrb[0].mxu0
    %v1006 = vadd.f32 0.0, %v1005
    %1007 = vmatprep.mubr.f32.mxu0 0.0
    %1008 = vmatmul.mubr.f32.gmra.mrb[0].mxu0 %v704
    %v1009 = vpop.f32.mrb[0].mxu0
    %v1010 = vadd.f32 0.0, %v1009
    %v1011 = vpop.f32.mrb[0].mxu0
    %v1012 = vadd.f32 0.0, %v1011
    %1013 = vmatprep.mubr.f32.mxu0 0.0
    %1014 = vmatmul.mubr.f32.gmra.mrb[0].mxu0 %v707
    %v1015 = vpop.f32.mrb[0].mxu0
    %v1016 = vadd.f32 0.0, %v1015
    %v1017 = vpop.f32.mrb[0].mxu0
    %v1018 = vadd.f32 0.0, %v1017
    %1019 = vmatprep.mubr.f32.mxu0 0.0
    %1020 = vmatmul.mubr.f32.gmra.mrb[0].mxu0 %v710
    %v1021 = vpop.f32.mrb[0].mxu0
    %v1022 = vadd.f32 0.0, %v1021
    %v1023 = vpop.f32.mrb[0].mxu0
    %v1024 = vadd.f32 0.0, %v1023
    %1025 = vmatprep.mubr.f32.mxu0 0.0
    %1026 = vmatmul.mubr.f32.gmra.mrb[0].mxu0 %v713
    %v1027 = vpop.f32.mrb[0].mxu0
    %v1028 = vadd.f32 0.0, %v1027
    %v1029 = vpop.f32.mrb[0].mxu0
    %v1030 = vadd.f32 0.0, %v1029
    %1031 = vmatprep.mubr.f32.mxu0 0.0
    %1032 = vmatmul.mubr.f32.gmra.mrb[0].mxu0 %v716
    %v1033 = vpop.f32.mrb[0].mxu0
    %v1034 = vadd.f32 0.0, %v1033
    %v1035 = vpop.f32.mrb[0].mxu0
    %v1036 = vadd.f32 0.0, %v1035
    %1037 = vmatprep.mubr.f32.mxu0 0.0
    %1038 = vmatmul.mubr.f32.gmra.mrb[0].mxu0 %v719
    %v1039 = vpop.f32.mrb[0].mxu0
    %v1040 = vadd.f32 0.0, %v1039
    %v1041 = vpop.f32.mrb[0].mxu0
    %v1042 = vadd.f32 0.0, %v1041
    %1043 = vmatprep.mubr.f32.mxu0 0.0
    %1044 = vmatmul.mubr.f32.gmra.mrb[0].mxu0 %v722
    %v1045 = vpop.f32.mrb[0].mxu0
    %v1046 = vadd.f32 0.0, %v1045
    %v1047 = vpop.f32.mrb[0].mxu0
    %v1048 = vadd.f32 0.0, %v1047
    %1049 = vmatprep.mubr.f32.mxu0 0.0
    %1050 = vmatmul.mubr.f32.gmra.mrb[0].mxu0 %v725
    %v1051 = vpop.f32.mrb[0].mxu0
    %v1052 = vadd.f32 0.0, %v1051
    %v1053 = vpop.f32.mrb[0].mxu0
    %v1054 = vadd.f32 0.0, %v1053
    %1055 = vmatprep.mubr.f32.mxu0 0.0
    %1056 = vmatmul.mubr.f32.gmra.mrb[0].mxu0 %v728
    %v1057 = vpop.f32.mrb[0].mxu0
    %v1058 = vadd.f32 0.0, %v1057
    %v1059 = vpop.f32.mrb[0].mxu0
    %v1060 = vadd.f32 0.0, %v1059
    %1061 = vmatprep.mubr.f32.mxu0 0.0
    %1062 = vmatmul.mubr.f32.gmra.mrb[0].mxu0 %v731
    %v1063 = vpop.f32.mrb[0].mxu0
    %v1064 = vadd.f32 0.0, %v1063
    %v1065 = vpop.f32.mrb[0].mxu0
    %v1066 = vadd.f32 0.0, %v1065
    %1067 = vmatprep.mubr.f32.mxu0 0.0
    %1068 = vmatmul.mubr.f32.gmra.mrb[0].mxu0 %v734
    %v1069 = vpop.f32.mrb[0].mxu0
    %v1070 = vadd.f32 0.0, %v1069
    %v1071 = vpop.f32.mrb[0].mxu0
    %v1072 = vadd.f32 0.0, %v1071
    %1073 = vmatprep.mubr.f32.mxu0 0.0
    %1074 = vmatmul.mubr.f32.gmra.mrb[0].mxu0 %v737
    %v1075 = vpop.f32.mrb[0].mxu0
    %v1076 = vadd.f32 0.0, %v1075
    %v1077 = vpop.f32.mrb[0].mxu0
    %v1078 = vadd.f32 0.0, %v1077
    %1079 = vmatprep.mubr.f32.mxu0 0.0
    %1080 = vmatmul.mubr.f32.gmra.mrb[0].mxu0 %v740
    %v1081 = vpop.f32.mrb[0].mxu0
    %v1082 = vadd.f32 0.0, %v1081
    %v1083 = vpop.f32.mrb[0].mxu0
    %v1084 = vadd.f32 0.0, %v1083
    %1085 = vmatprep.mubr.f32.mxu0 0.0
    %1086 = vmatmul.mubr.f32.gmra.mrb[0].mxu0 %v743
    %v1087 = vpop.f32.mrb[0].mxu0
    %v1088 = vadd.f32 0.0, %v1087
    %v1089 = vpop.f32.mrb[0].mxu0
    %v1090 = vadd.f32 0.0, %v1089
    %1091 = vmatprep.mubr.f32.mxu0 0.0
    %1092 = vmatmul.mubr.f32.gmra.mrb[0].mxu0 %v746
    %v1093 = vpop.f32.mrb[0].mxu0
    %v1094 = vadd.f32 0.0, %v1093
    %v1095 = vpop.f32.mrb[0].mxu0
    %v1096 = vadd.f32 0.0, %v1095
    %1097 = vmatprep.mubr.f32.mxu0 0.0
    %1098 = vmatmul.mubr.f32.gmra.mrb[0].mxu0 %v749
    %v1099 = vpop.f32.mrb[0].mxu0
    %v1100 = vadd.f32 0.0, %v1099
    %v1101 = vpop.f32.mrb[0].mxu0
    %v1102 = vadd.f32 0.0, %v1101
    %1103 = vdwg.mxu0
    %v1104 = vmax.f32 %v914, %v916
    %1105 = vmax.xlane.f32.xlu0 %v1104
    %v1106 = vpop.xlane.xlu0 %1105
    %v1107 = vmax.f32 %v920, %v922
    %1108 = vmax.xlane.f32.xlu0 %v1107
    %v1109 = vpop.xlane.xlu0 %1108
    %v1110 = vmax.f32 %v926, %v928
    %1111 = vmax.xlane.f32.xlu0 %v1110
    %v1112 = vpop.xlane.xlu0 %1111
    %v1113 = vmax.f32 %v932, %v934
    %1114 = vmax.xlane.f32.xlu0 %v1113
    %v1115 = vpop.xlane.xlu0 %1114
    %v1116 = vmax.f32 %v938, %v940
    %1117 = vmax.xlane.f32.xlu0 %v1116
    %v1118 = vpop.xlane.xlu0 %1117
    %v1119 = vmax.f32 %v944, %v946
    %1120 = vmax.xlane.f32.xlu0 %v1119
    %v1121 = vpop.xlane.xlu0 %1120
    %v1122 = vmax.f32 %v950, %v952
    %1123 = vmax.xlane.f32.xlu0 %v1122
    %v1124 = vpop.xlane.xlu0 %1123
    %v1125 = vmax.f32 %v956, %v958
    %1126 = vmax.xlane.f32.xlu0 %v1125
    %v1127 = vpop.xlane.xlu0 %1126
    %v1128 = vmax.f32 %v962, %v964
    %1129 = vmax.xlane.f32.xlu0 %v1128
    %v1130 = vpop.xlane.xlu0 %1129
    %v1131 = vmax.f32 %v968, %v970
    %1132 = vmax.xlane.f32.xlu0 %v1131
    %v1133 = vpop.xlane.xlu0 %1132
    %v1134 = vmax.f32 %v974, %v976
    %1135 = vmax.xlane.f32.xlu0 %v1134
    %v1136 = vpop.xlane.xlu0 %1135
    %v1137 = vmax.f32 %v980, %v982
    %1138 = vmax.xlane.f32.xlu0 %v1137
    %v1139 = vpop.xlane.xlu0 %1138
    %v1140 = vmax.f32 %v986, %v988
    %1141 = vmax.xlane.f32.xlu0 %v1140
    %v1142 = vpop.xlane.xlu0 %1141
    %v1143 = vmax.f32 %v992, %v994
    %1144 = vmax.xlane.f32.xlu0 %v1143
    %v1145 = vpop.xlane.xlu0 %1144
    %v1146 = vmax.f32 %v998, %v1000
    %1147 = vmax.xlane.f32.xlu0 %v1146
    %v1148 = vpop.xlane.xlu0 %1147
    %v1149 = vmax.f32 %v1004, %v1006
    %1150 = vmax.xlane.f32.xlu0 %v1149
    %v1151 = vpop.xlane.xlu0 %1150
    %v1152 = vmax.f32 %v1010, %v1012
    %1153 = vmax.xlane.f32.xlu0 %v1152
    %v1154 = vpop.xlane.xlu0 %1153
    %v1155 = vmax.f32 %v1016, %v1018
    %1156 = vmax.xlane.f32.xlu0 %v1155
    %v1157 = vpop.xlane.xlu0 %1156
    %v1158 = vmax.f32 %v1022, %v1024
    %1159 = vmax.xlane.f32.xlu0 %v1158
    %v1160 = vpop.xlane.xlu0 %1159
    %v1161 = vmax.f32 %v1028, %v1030
    %1162 = vmax.xlane.f32.xlu0 %v1161
    %v1163 = vpop.xlane.xlu0 %1162
    %v1164 = vmax.f32 %v1034, %v1036
    %1165 = vmax.xlane.f32.xlu0 %v1164
    %v1166 = vpop.xlane.xlu0 %1165
    %v1167 = vmax.f32 %v1040, %v1042
    %1168 = vmax.xlane.f32.xlu0 %v1167
    %v1169 = vpop.xlane.xlu0 %1168
    %v1170 = vmax.f32 %v1046, %v1048
    %1171 = vmax.xlane.f32.xlu0 %v1170
    %v1172 = vpop.xlane.xlu0 %1171
    %v1173 = vmax.f32 %v1052, %v1054
    %1174 = vmax.xlane.f32.xlu0 %v1173
    %v1175 = vpop.xlane.xlu0 %1174
    %v1176 = vmax.f32 %v1058, %v1060
    %1177 = vmax.xlane.f32.xlu0 %v1176
    %v1178 = vpop.xlane.xlu0 %1177
    %v1179 = vmax.f32 %v1064, %v1066
    %1180 = vmax.xlane.f32.xlu0 %v1179
    %v1181 = vpop.xlane.xlu0 %1180
    %v1182 = vmax.f32 %v1070, %v1072
    %1183 = vmax.xlane.f32.xlu0 %v1182
    %v1184 = vpop.xlane.xlu0 %1183
    %v1185 = vmax.f32 %v1076, %v1078
    %1186 = vmax.xlane.f32.xlu0 %v1185
    %v1187 = vpop.xlane.xlu0 %1186
    %v1188 = vmax.f32 %v1082, %v1084
    %1189 = vmax.xlane.f32.xlu0 %v1188
    %v1190 = vpop.xlane.xlu0 %1189
    %v1191 = vmax.f32 %v1088, %v1090
    %1192 = vmax.xlane.f32.xlu0 %v1191
    %v1193 = vpop.xlane.xlu0 %1192
    %v1194 = vmax.f32 %v1094, %v1096
    %1195 = vmax.xlane.f32.xlu0 %v1194
    %v1196 = vpop.xlane.xlu0 %1195
    %v1197 = vmax.f32 %v1100, %v1102
    %1198 = vmax.xlane.f32.xlu0 %v1197
    %v1199 = vpop.xlane.xlu0 %1198
    %v1200 = vsub.f32 %v914, %v1106
    %v1201 = vsub.f32 %v916, %v1106
    %v1202 = vsub.f32 %v920, %v1109
    %v1203 = vsub.f32 %v922, %v1109
    %v1204 = vsub.f32 %v926, %v1112
    %v1205 = vsub.f32 %v928, %v1112
    %v1206 = vsub.f32 %v932, %v1115
    %v1207 = vsub.f32 %v934, %v1115
    %v1208 = vsub.f32 %v938, %v1118
    %v1209 = vsub.f32 %v940, %v1118
    %v1210 = vsub.f32 %v944, %v1121
    %v1211 = vsub.f32 %v946, %v1121
    %v1212 = vsub.f32 %v950, %v1124
    %v1213 = vsub.f32 %v952, %v1124
    %v1214 = vsub.f32 %v956, %v1127
    %v1215 = vsub.f32 %v958, %v1127
    %v1216 = vsub.f32 %v962, %v1130
    %v1217 = vsub.f32 %v964, %v1130
    %v1218 = vsub.f32 %v968, %v1133
    %v1219 = vsub.f32 %v970, %v1133
    %v1220 = vsub.f32 %v974, %v1136
    %v1221 = vsub.f32 %v976, %v1136
    %v1222 = vsub.f32 %v980, %v1139
    %v1223 = vsub.f32 %v982, %v1139
    %v1224 = vsub.f32 %v986, %v1142
    %v1225 = vsub.f32 %v988, %v1142
    %v1226 = vsub.f32 %v992, %v1145
    %v1227 = vsub.f32 %v994, %v1145
    %v1228 = vsub.f32 %v998, %v1148
    %v1229 = vsub.f32 %v1000, %v1148
    %v1230 = vsub.f32 %v1004, %v1151
    %v1231 = vsub.f32 %v1006, %v1151
    %v1232 = vsub.f32 %v1010, %v1154
    %v1233 = vsub.f32 %v1012, %v1154
    %v1234 = vsub.f32 %v1016, %v1157
    %v1235 = vsub.f32 %v1018, %v1157
    %v1236 = vsub.f32 %v1022, %v1160
    %v1237 = vsub.f32 %v1024, %v1160
    %v1238 = vsub.f32 %v1028, %v1163
    %v1239 = vsub.f32 %v1030, %v1163
    %v1240 = vsub.f32 %v1034, %v1166
    %v1241 = vsub.f32 %v1036, %v1166
    %v1242 = vsub.f32 %v1040, %v1169
    %v1243 = vsub.f32 %v1042, %v1169
    %v1244 = vsub.f32 %v1046, %v1172
    %v1245 = vsub.f32 %v1048, %v1172
    %v1246 = vsub.f32 %v1052, %v1175
    %v1247 = vsub.f32 %v1054, %v1175
    %v1248 = vsub.f32 %v1058, %v1178
    %v1249 = vsub.f32 %v1060, %v1178
    %v1250 = vsub.f32 %v1064, %v1181
    %v1251 = vsub.f32 %v1066, %v1181
    %v1252 = vsub.f32 %v1070, %v1184
    %v1253 = vsub.f32 %v1072, %v1184
    %v1254 = vsub.f32 %v1076, %v1187
    %v1255 = vsub.f32 %v1078, %v1187
    %v1256 = vsub.f32 %v1082, %v1190
    %v1257 = vsub.f32 %v1084, %v1190
    %v1258 = vsub.f32 %v1088, %v1193
    %v1259 = vsub.f32 %v1090, %v1193
    %v1260 = vsub.f32 %v1094, %v1196
    %v1261 = vsub.f32 %v1096, %v1196
    %v1262 = vsub.f32 %v1100, %v1199
    %v1263 = vsub.f32 %v1102, %v1199
    %v1264 = vmul.f32 %v1200, 1.442695
    %v1265 = vpow.pop %v1264
    %v1266 = vmul.f32 %v1201, 1.442695
    %v1267 = vpow.pop %v1266
    %v1268 = vmul.f32 %v1202, 1.442695
    %v1269 = vpow.pop %v1268
    %v1270 = vmul.f32 %v1203, 1.442695
    %v1271 = vpow.pop %v1270
    %v1272 = vmul.f32 %v1204, 1.442695
    %v1273 = vpow.pop %v1272
    %v1274 = vmul.f32 %v1205, 1.442695
    %v1275 = vpow.pop %v1274
    %v1276 = vmul.f32 %v1206, 1.442695
    %v1277 = vpow.pop %v1276
    %v1278 = vmul.f32 %v1207, 1.442695
    %v1279 = vpow.pop %v1278
    %v1280 = vmul.f32 %v1208, 1.442695
    %v1281 = vpow.pop %v1280
    %v1282 = vmul.f32 %v1209, 1.442695
    %v1283 = vpow.pop %v1282
    %v1284 = vmul.f32 %v1210, 1.442695
    %v1285 = vpow.pop %v1284
    %v1286 = vmul.f32 %v1211, 1.442695
    %v1287 = vpow.pop %v1286
    %v1288 = vmul.f32 %v1212, 1.442695
    %v1289 = vpow.pop %v1288
    %v1290 = vmul.f32 %v1213, 1.442695
    %v1291 = vpow.pop %v1290
    %v1292 = vmul.f32 %v1214, 1.442695
    %v1293 = vpow.pop %v1292
    %v1294 = vmul.f32 %v1215, 1.442695
    %v1295 = vpow.pop %v1294
    %v1296 = vmul.f32 %v1216, 1.442695
    %v1297 = vpow.pop %v1296
    %v1298 = vmul.f32 %v1217, 1.442695
    %v1299 = vpow.pop %v1298
    %v1300 = vmul.f32 %v1218, 1.442695
    %v1301 = vpow.pop %v1300
    %v1302 = vmul.f32 %v1219, 1.442695
    %v1303 = vpow.pop %v1302
    %v1304 = vmul.f32 %v1220, 1.442695
    %v1305 = vpow.pop %v1304
    %v1306 = vmul.f32 %v1221, 1.442695
    %v1307 = vpow.pop %v1306
    %v1308 = vmul.f32 %v1222, 1.442695
    %v1309 = vpow.pop %v1308
    %v1310 = vmul.f32 %v1223, 1.442695
    %v1311 = vpow.pop %v1310
    %v1312 = vmul.f32 %v1224, 1.442695
    %v1313 = vpow.pop %v1312
    %v1314 = vmul.f32 %v1225, 1.442695
    %v1315 = vpow.pop %v1314
    %v1316 = vmul.f32 %v1226, 1.442695
    %v1317 = vpow.pop %v1316
    %v1318 = vmul.f32 %v1227, 1.442695
    %v1319 = vpow.pop %v1318
    %v1320 = vmul.f32 %v1228, 1.442695
    %v1321 = vpow.pop %v1320
    %v1322 = vmul.f32 %v1229, 1.442695
    %v1323 = vpow.pop %v1322
    %v1324 = vmul.f32 %v1230, 1.442695
    %v1325 = vpow.pop %v1324
    %v1326 = vmul.f32 %v1231, 1.442695
    %v1327 = vpow.pop %v1326
    %v1328 = vmul.f32 %v1232, 1.442695
    %v1329 = vpow.pop %v1328
    %v1330 = vmul.f32 %v1233, 1.442695
    %v1331 = vpow.pop %v1330
    %v1332 = vmul.f32 %v1234, 1.442695
    %v1333 = vpow.pop %v1332
    %v1334 = vmul.f32 %v1235, 1.442695
    %v1335 = vpow.pop %v1334
    %v1336 = vmul.f32 %v1236, 1.442695
    %v1337 = vpow.pop %v1336
    %v1338 = vmul.f32 %v1237, 1.442695
    %v1339 = vpow.pop %v1338
    %v1340 = vmul.f32 %v1238, 1.442695
    %v1341 = vpow.pop %v1340
    %v1342 = vmul.f32 %v1239, 1.442695
    %v1343 = vpow.pop %v1342
    %v1344 = vmul.f32 %v1240, 1.442695
    %v1345 = vpow.pop %v1344
    %v1346 = vmul.f32 %v1241, 1.442695
    %v1347 = vpow.pop %v1346
    %v1348 = vmul.f32 %v1242, 1.442695
    %v1349 = vpow.pop %v1348
    %v1350 = vmul.f32 %v1243, 1.442695
    %v1351 = vpow.pop %v1350
    %v1352 = vmul.f32 %v1244, 1.442695
    %v1353 = vpow.pop %v1352
    %v1354 = vmul.f32 %v1245, 1.442695
    %v1355 = vpow.pop %v1354
    %v1356 = vmul.f32 %v1246, 1.442695
    %v1357 = vpow.pop %v1356
    %v1358 = vmul.f32 %v1247, 1.442695
    %v1359 = vpow.pop %v1358
    %v1360 = vmul.f32 %v1248, 1.442695
    %v1361 = vpow.pop %v1360
    %v1362 = vmul.f32 %v1249, 1.442695
    %v1363 = vpow.pop %v1362
    %v1364 = vmul.f32 %v1250, 1.442695
    %v1365 = vpow.pop %v1364
    %v1366 = vmul.f32 %v1251, 1.442695
    %v1367 = vpow.pop %v1366
    %v1368 = vmul.f32 %v1252, 1.442695
    %v1369 = vpow.pop %v1368
    %v1370 = vmul.f32 %v1253, 1.442695
    %v1371 = vpow.pop %v1370
    %v1372 = vmul.f32 %v1254, 1.442695
    %v1373 = vpow.pop %v1372
    %v1374 = vmul.f32 %v1255, 1.442695
    %v1375 = vpow.pop %v1374
    %v1376 = vmul.f32 %v1256, 1.442695
    %v1377 = vpow.pop %v1376
    %v1378 = vmul.f32 %v1257, 1.442695
    %v1379 = vpow.pop %v1378
    %v1380 = vmul.f32 %v1258, 1.442695
    %v1381 = vpow.pop %v1380
    %v1382 = vmul.f32 %v1259, 1.442695
    %v1383 = vpow.pop %v1382
    %v1384 = vmul.f32 %v1260, 1.442695
    %v1385 = vpow.pop %v1384
    %v1386 = vmul.f32 %v1261, 1.442695
    %v1387 = vpow.pop %v1386
    %v1388 = vmul.f32 %v1262, 1.442695
    %v1389 = vpow.pop %v1388
    %v1390 = vmul.f32 %v1263, 1.442695
    %v1391 = vpow.pop %v1390
    %v1392 = vadd.f32 %v1265, %v1267
    %1393 = vadd.xlane.f32.xlu0 %v1392
    %v1394 = vpop.xlane.xlu0 %1393
    %v1395 = vadd.f32 %v1269, %v1271
    %1396 = vadd.xlane.f32.xlu0 %v1395
    %v1397 = vpop.xlane.xlu0 %1396
    %v1398 = vadd.f32 %v1273, %v1275
    %1399 = vadd.xlane.f32.xlu0 %v1398
    %v1400 = vpop.xlane.xlu0 %1399
    %v1401 = vadd.f32 %v1277, %v1279
    %1402 = vadd.xlane.f32.xlu0 %v1401
    %v1403 = vpop.xlane.xlu0 %1402
    %v1404 = vadd.f32 %v1281, %v1283
    %1405 = vadd.xlane.f32.xlu0 %v1404
    %v1406 = vpop.xlane.xlu0 %1405
    %v1407 = vadd.f32 %v1285, %v1287
    %1408 = vadd.xlane.f32.xlu0 %v1407
    %v1409 = vpop.xlane.xlu0 %1408
    %v1410 = vadd.f32 %v1289, %v1291
    %1411 = vadd.xlane.f32.xlu0 %v1410
    %v1412 = vpop.xlane.xlu0 %1411
    %v1413 = vadd.f32 %v1293, %v1295
    %1414 = vadd.xlane.f32.xlu0 %v1413
    %v1415 = vpop.xlane.xlu0 %1414
    %v1416 = vadd.f32 %v1297, %v1299
    %1417 = vadd.xlane.f32.xlu0 %v1416
    %v1418 = vpop.xlane.xlu0 %1417
    %v1419 = vadd.f32 %v1301, %v1303
    %1420 = vadd.xlane.f32.xlu0 %v1419
    %v1421 = vpop.xlane.xlu0 %1420
    %v1422 = vadd.f32 %v1305, %v1307
    %1423 = vadd.xlane.f32.xlu0 %v1422
    %v1424 = vpop.xlane.xlu0 %1423
    %v1425 = vadd.f32 %v1309, %v1311
    %1426 = vadd.xlane.f32.xlu0 %v1425
    %v1427 = vpop.xlane.xlu0 %1426
    %v1428 = vadd.f32 %v1313, %v1315
    %1429 = vadd.xlane.f32.xlu0 %v1428
    %v1430 = vpop.xlane.xlu0 %1429
    %v1431 = vadd.f32 %v1317, %v1319
    %1432 = vadd.xlane.f32.xlu0 %v1431
    %v1433 = vpop.xlane.xlu0 %1432
    %v1434 = vadd.f32 %v1321, %v1323
    %1435 = vadd.xlane.f32.xlu0 %v1434
    %v1436 = vpop.xlane.xlu0 %1435
    %v1437 = vadd.f32 %v1325, %v1327
    %1438 = vadd.xlane.f32.xlu0 %v1437
    %v1439 = vpop.xlane.xlu0 %1438
    %v1440 = vadd.f32 %v1329, %v1331
    %1441 = vadd.xlane.f32.xlu0 %v1440
    %v1442 = vpop.xlane.xlu0 %1441
    %v1443 = vadd.f32 %v1333, %v1335
    %1444 = vadd.xlane.f32.xlu0 %v1443
    %v1445 = vpop.xlane.xlu0 %1444
    %v1446 = vadd.f32 %v1337, %v1339
    %1447 = vadd.xlane.f32.xlu0 %v1446
    %v1448 = vpop.xlane.xlu0 %1447
    %v1449 = vadd.f32 %v1341, %v1343
    %1450 = vadd.xlane.f32.xlu0 %v1449
    %v1451 = vpop.xlane.xlu0 %1450
    %v1452 = vadd.f32 %v1345, %v1347
    %1453 = vadd.xlane.f32.xlu0 %v1452
    %v1454 = vpop.xlane.xlu0 %1453
    %v1455 = vadd.f32 %v1349, %v1351
    %1456 = vadd.xlane.f32.xlu0 %v1455
    %v1457 = vpop.xlane.xlu0 %1456
    %v1458 = vadd.f32 %v1353, %v1355
    %1459 = vadd.xlane.f32.xlu0 %v1458
    %v1460 = vpop.xlane.xlu0 %1459
    %v1461 = vadd.f32 %v1357, %v1359
    %1462 = vadd.xlane.f32.xlu0 %v1461
    %v1463 = vpop.xlane.xlu0 %1462
    %v1464 = vadd.f32 %v1361, %v1363
    %1465 = vadd.xlane.f32.xlu0 %v1464
    %v1466 = vpop.xlane.xlu0 %1465
    %v1467 = vadd.f32 %v1365, %v1367
    %1468 = vadd.xlane.f32.xlu0 %v1467
    %v1469 = vpop.xlane.xlu0 %1468
    %v1470 = vadd.f32 %v1369, %v1371
    %1471 = vadd.xlane.f32.xlu0 %v1470
    %v1472 = vpop.xlane.xlu0 %1471
    %v1473 = vadd.f32 %v1373, %v1375
    %1474 = vadd.xlane.f32.xlu0 %v1473
    %v1475 = vpop.xlane.xlu0 %1474
    %v1476 = vadd.f32 %v1377, %v1379
    %1477 = vadd.xlane.f32.xlu0 %v1476
    %v1478 = vpop.xlane.xlu0 %1477
    %v1479 = vadd.f32 %v1381, %v1383
    %1480 = vadd.xlane.f32.xlu0 %v1479
    %v1481 = vpop.xlane.xlu0 %1480
    %v1482 = vadd.f32 %v1385, %v1387
    %1483 = vadd.xlane.f32.xlu0 %v1482
    %v1484 = vpop.xlane.xlu0 %1483
    %v1485 = vadd.f32 %v1389, %v1391
    %1486 = vadd.xlane.f32.xlu0 %v1485
    %v1487 = vpop.xlane.xlu0 %1486
    %v1488 = vrcp.pop %v1394
    %v1489 = vrcp.pop %v1397
    %v1490 = vrcp.pop %v1400
    %v1491 = vrcp.pop %v1403
    %v1492 = vrcp.pop %v1406
    %v1493 = vrcp.pop %v1409
    %v1494 = vrcp.pop %v1412
    %v1495 = vrcp.pop %v1415
    %v1496 = vrcp.pop %v1418
    %v1497 = vrcp.pop %v1421
    %v1498 = vrcp.pop %v1424
    %v1499 = vrcp.pop %v1427
    %v1500 = vrcp.pop %v1430
    %v1501 = vrcp.pop %v1433
    %v1502 = vrcp.pop %v1436
    %v1503 = vrcp.pop %v1439
    %v1504 = vrcp.pop %v1442
    %v1505 = vrcp.pop %v1445
    %v1506 = vrcp.pop %v1448
    %v1507 = vrcp.pop %v1451
    %v1508 = vrcp.pop %v1454
    %v1509 = vrcp.pop %v1457
    %v1510 = vrcp.pop %v1460
    %v1511 = vrcp.pop %v1463
    %v1512 = vrcp.pop %v1466
    %v1513 = vrcp.pop %v1469
    %v1514 = vrcp.pop %v1472
    %v1515 = vrcp.pop %v1475
    %v1516 = vrcp.pop %v1478
    %v1517 = vrcp.pop %v1481
    %v1518 = vrcp.pop %v1484
    %v1519 = vrcp.pop %v1487
    %v1520 = vmul.f32 %v1265, %v1488
    %v1521 = vmul.f32 %v1267, %v1488
    %v1522 = vmul.f32 %v1269, %v1489
    %v1523 = vmul.f32 %v1271, %v1489
    %v1524 = vmul.f32 %v1273, %v1490
    %v1525 = vmul.f32 %v1275, %v1490
    %v1526 = vmul.f32 %v1277, %v1491
    %v1527 = vmul.f32 %v1279, %v1491
    %v1528 = vmul.f32 %v1281, %v1492
    %v1529 = vmul.f32 %v1283, %v1492
    %v1530 = vmul.f32 %v1285, %v1493
    %v1531 = vmul.f32 %v1287, %v1493
    %v1532 = vmul.f32 %v1289, %v1494
    %v1533 = vmul.f32 %v1291, %v1494
    %v1534 = vmul.f32 %v1293, %v1495
    %v1535 = vmul.f32 %v1295, %v1495
    %v1536 = vmul.f32 %v1297, %v1496
    %v1537 = vmul.f32 %v1299, %v1496
    %v1538 = vmul.f32 %v1301, %v1497
    %v1539 = vmul.f32 %v1303, %v1497
    %v1540 = vmul.f32 %v1305, %v1498
    %v1541 = vmul.f32 %v1307, %v1498
    %v1542 = vmul.f32 %v1309, %v1499
    %v1543 = vmul.f32 %v1311, %v1499
    %v1544 = vmul.f32 %v1313, %v1500
    %v1545 = vmul.f32 %v1315, %v1500
    %v1546 = vmul.f32 %v1317, %v1501
    %v1547 = vmul.f32 %v1319, %v1501
    %v1548 = vmul.f32 %v1321, %v1502
    %v1549 = vmul.f32 %v1323, %v1502
    %v1550 = vmul.f32 %v1325, %v1503
    %v1551 = vmul.f32 %v1327, %v1503
    %v1552 = vmul.f32 %v1329, %v1504
    %v1553 = vmul.f32 %v1331, %v1504
    %v1554 = vmul.f32 %v1333, %v1505
    %v1555 = vmul.f32 %v1335, %v1505
    %v1556 = vmul.f32 %v1337, %v1506
    %v1557 = vmul.f32 %v1339, %v1506
    %v1558 = vmul.f32 %v1341, %v1507
    %v1559 = vmul.f32 %v1343, %v1507
    %v1560 = vmul.f32 %v1345, %v1508
    %v1561 = vmul.f32 %v1347, %v1508
    %v1562 = vmul.f32 %v1349, %v1509
    %v1563 = vmul.f32 %v1351, %v1509
    %v1564 = vmul.f32 %v1353, %v1510
    %v1565 = vmul.f32 %v1355, %v1510
    %v1566 = vmul.f32 %v1357, %v1511
    %v1567 = vmul.f32 %v1359, %v1511
    %v1568 = vmul.f32 %v1361, %v1512
    %v1569 = vmul.f32 %v1363, %v1512
    %v1570 = vmul.f32 %v1365, %v1513
    %v1571 = vmul.f32 %v1367, %v1513
    %v1572 = vmul.f32 %v1369, %v1514
    %v1573 = vmul.f32 %v1371, %v1514
    %v1574 = vmul.f32 %v1373, %v1515
    %v1575 = vmul.f32 %v1375, %v1515
    %v1576 = vmul.f32 %v1377, %v1516
    %v1577 = vmul.f32 %v1379, %v1516
    %v1578 = vmul.f32 %v1381, %v1517
    %v1579 = vmul.f32 %v1383, %v1517
    %v1580 = vmul.f32 %v1385, %v1518
    %v1581 = vmul.f32 %v1387, %v1518
    %v1582 = vmul.f32 %v1389, %v1519
    %v1583 = vmul.f32 %v1391, %v1519
    %1584 = vst [vmem:[#allocation11] sm:$0xff] %v1520
    %1585 = vst [vmem:[#allocation11 + $0x8] sm:$0xff] %v1521
    %1586 = vst [vmem:[#allocation11 + $0x10] sm:$0xff] %v1522
    %1587 = vst [vmem:[#allocation11 + $0x18] sm:$0xff] %v1523
    %1588 = vst [vmem:[#allocation11 + $0x20] sm:$0xff] %v1524
    %1589 = vst [vmem:[#allocation11 + $0x28] sm:$0xff] %v1525
    %1590 = vst [vmem:[#allocation11 + $0x30] sm:$0xff] %v1526
    %1591 = vst [vmem:[#allocation11 + $0x38] sm:$0xff] %v1527
    %1592 = vst [vmem:[#allocation11 + $0x40] sm:$0xff] %v1528
    %1593 = vst [vmem:[#allocation11 + $0x48] sm:$0xff] %v1529
    %1594 = vst [vmem:[#allocation11 + $0x50] sm:$0xff] %v1530
    %1595 = vst [vmem:[#allocation11 + $0x58] sm:$0xff] %v1531
    %1596 = vst [vmem:[#allocation11 + $0x60] sm:$0xff] %v1532
    %1597 = vst [vmem:[#allocation11 + $0x68] sm:$0xff] %v1533
    %1598 = vst [vmem:[#allocation11 + $0x70] sm:$0xff] %v1534
    %1599 = vst [vmem:[#allocation11 + $0x78] sm:$0xff] %v1535
    %1600 = vst [vmem:[#allocation11 + $0x80] sm:$0xff] %v1536
    %1601 = vst [vmem:[#allocation11 + $0x88] sm:$0xff] %v1537
    %1602 = vst [vmem:[#allocation11 + $0x90] sm:$0xff] %v1538
    %1603 = vst [vmem:[#allocation11 + $0x98] sm:$0xff] %v1539
    %1604 = vst [vmem:[#allocation11 + $0xa0] sm:$0xff] %v1540
    %1605 = vst [vmem:[#allocation11 + $0xa8] sm:$0xff] %v1541
    %1606 = vst [vmem:[#allocation11 + $0xb0] sm:$0xff] %v1542
    %1607 = vst [vmem:[#allocation11 + $0xb8] sm:$0xff] %v1543
    %1608 = vst [vmem:[#allocation11 + $0xc0] sm:$0xff] %v1544
    %1609 = vst [vmem:[#allocation11 + $0xc8] sm:$0xff] %v1545
    %1610 = vst [vmem:[#allocation11 + $0xd0] sm:$0xff] %v1546
    %1611 = vst [vmem:[#allocation11 + $0xd8] sm:$0xff] %v1547
    %1612 = vst [vmem:[#allocation11 + $0xe0] sm:$0xff] %v1548
    %1613 = vst [vmem:[#allocation11 + $0xe8] sm:$0xff] %v1549
    %1614 = vst [vmem:[#allocation11 + $0xf0] sm:$0xff] %v1550
    %1615 = vst [vmem:[#allocation11 + $0xf8] sm:$0xff] %v1551
    %1616 = vst [vmem:[#allocation11 + $0x100] sm:$0xff] %v1552
    %1617 = vst [vmem:[#allocation11 + $0x108] sm:$0xff] %v1553
    %1618 = vst [vmem:[#allocation11 + $0x110] sm:$0xff] %v1554
    %1619 = vst [vmem:[#allocation11 + $0x118] sm:$0xff] %v1555
    %1620 = vst [vmem:[#allocation11 + $0x120] sm:$0xff] %v1556
    %1621 = vst [vmem:[#allocation11 + $0x128] sm:$0xff] %v1557
    %1622 = vst [vmem:[#allocation11 + $0x130] sm:$0xff] %v1558
    %1623 = vst [vmem:[#allocation11 + $0x138] sm:$0xff] %v1559
    %1624 = vst [vmem:[#allocation11 + $0x140] sm:$0xff] %v1560
    %1625 = vst [vmem:[#allocation11 + $0x148] sm:$0xff] %v1561
    %1626 = vst [vmem:[#allocation11 + $0x150] sm:$0xff] %v1562
    %1627 = vst [vmem:[#allocation11 + $0x158] sm:$0xff] %v1563
    %1628 = vst [vmem:[#allocation11 + $0x160] sm:$0xff] %v1564
    %1629 = vst [vmem:[#allocation11 + $0x168] sm:$0xff] %v1565
    %1630 = vst [vmem:[#allocation11 + $0x170] sm:$0xff] %v1566
    %1631 = vst [vmem:[#allocation11 + $0x178] sm:$0xff] %v1567
    %1632 = vst [vmem:[#allocation11 + $0x180] sm:$0xff] %v1568
    %1633 = vst [vmem:[#allocation11 + $0x188] sm:$0xff] %v1569
    %1634 = vst [vmem:[#allocation11 + $0x190] sm:$0xff] %v1570
    %1635 = vst [vmem:[#allocation11 + $0x198] sm:$0xff] %v1571
    %1636 = vst [vmem:[#allocation11 + $0x1a0] sm:$0xff] %v1572
    %1637 = vst [vmem:[#allocation11 + $0x1a8] sm:$0xff] %v1573
    %1638 = vst [vmem:[#allocation11 + $0x1b0] sm:$0xff] %v1574
    %1639 = vst [vmem:[#allocation11 + $0x1b8] sm:$0xff] %v1575
    %1640 = vst [vmem:[#allocation11 + $0x1c0] sm:$0xff] %v1576
    %1641 = vst [vmem:[#allocation11 + $0x1c8] sm:$0xff] %v1577
    %1642 = vst [vmem:[#allocation11 + $0x1d0] sm:$0xff] %v1578
    %1643 = vst [vmem:[#allocation11 + $0x1d8] sm:$0xff] %v1579
    %1644 = vst [vmem:[#allocation11 + $0x1e0] sm:$0xff] %v1580
    %1645 = vst [vmem:[#allocation11 + $0x1e8] sm:$0xff] %v1581
    %1646 = vst [vmem:[#allocation11 + $0x1f0] sm:$0xff] %v1582
    %1647 = vst [vmem:[#allocation11 + $0x1f8] sm:$0xff] %v1583
    %1648 = vmatprep.subr.mxu0 %v1521
    %1649 = vmatpush1.xpose.msra.mxu0 %v1520
    %1650 = vmatprep.subr.mxu0 %v1523
    %1651 = vmatpush1.xpose.msra.mxu0 %v1522
    %1652 = vmatprep.subr.mxu0 %v1525
    %1653 = vmatpush1.xpose.msra.mxu0 %v1524
    %1654 = vmatprep.subr.mxu0 %v1527
    %1655 = vmatpush1.xpose.msra.mxu0 %v1526
    %1656 = vmatprep.subr.mxu0 %v1529
    %1657 = vmatpush1.xpose.msra.mxu0 %v1528
    %1658 = vmatprep.subr.mxu0 %v1531
    %1659 = vmatpush1.xpose.msra.mxu0 %v1530
    %1660 = vmatprep.subr.mxu0 %v1533
    %1661 = vmatpush1.xpose.msra.mxu0 %v1532
    %1662 = vmatprep.subr.mxu0 %v1535
    %1663 = vmatpush1.xpose.msra.mxu0 %v1534
    %1664 = vmatprep.subr.mxu0 %v1537
    %1665 = vmatpush1.xpose.msra.mxu0 %v1536
    %1666 = vmatprep.subr.mxu0 %v1539
    %1667 = vmatpush1.xpose.msra.mxu0 %v1538
    %1668 = vmatprep.subr.mxu0 %v1541
    %1669 = vmatpush1.xpose.msra.mxu0 %v1540
    %1670 = vmatprep.subr.mxu0 %v1543
    %1671 = vmatpush1.xpose.msra.mxu0 %v1542
    %1672 = vmatprep.subr.mxu0 %v1545
    %1673 = vmatpush1.xpose.msra.mxu0 %v1544
    %1674 = vmatprep.subr.mxu0 %v1547
    %1675 = vmatpush1.xpose.msra.mxu0 %v1546
    %1676 = vmatprep.subr.mxu0 %v1549
    %1677 = vmatpush1.xpose.msra.mxu0 %v1548
    %1678 = vmatprep.subr.mxu0 %v1551
    %1679 = vmatpush1.xpose.msra.mxu0 %v1550
    %1680 = vmatprep.subr.mxu0 %v1553
    %1681 = vmatpush1.xpose.msra.mxu0 %v1552
    %1682 = vmatprep.subr.mxu0 %v1555
    %1683 = vmatpush1.xpose.msra.mxu0 %v1554
    %1684 = vmatprep.subr.mxu0 %v1557
    %1685 = vmatpush1.xpose.msra.mxu0 %v1556
    %1686 = vmatprep.subr.mxu0 %v1559
    %1687 = vmatpush1.xpose.msra.mxu0 %v1558
    %1688 = vmatprep.subr.mxu0 %v1561
    %1689 = vmatpush1.xpose.msra.mxu0 %v1560
    %1690 = vmatprep.subr.mxu0 %v1563
    %1691 = vmatpush1.xpose.msra.mxu0 %v1562
    %1692 = vmatprep.subr.mxu0 %v1565
    %1693 = vmatpush1.xpose.msra.mxu0 %v1564
    %1694 = vmatprep.subr.mxu0 %v1567
    %1695 = vmatpush1.xpose.msra.mxu0 %v1566
    %1696 = vmatprep.subr.mxu0 %v1569
    %1697 = vmatpush1.xpose.msra.mxu0 %v1568
    %1698 = vmatprep.subr.mxu0 %v1571
    %1699 = vmatpush1.xpose.msra.mxu0 %v1570
    %1700 = vmatprep.subr.mxu0 %v1573
    %1701 = vmatpush1.xpose.msra.mxu0 %v1572
    %1702 = vmatprep.subr.mxu0 %v1575
    %1703 = vmatpush1.xpose.msra.mxu0 %v1574
    %1704 = vmatprep.subr.mxu0 %v1577
    %1705 = vmatpush1.xpose.msra.mxu0 %v1576
    %1706 = vmatprep.subr.mxu0 %v1579
    %1707 = vmatpush1.xpose.msra.mxu0 %v1578
    %1708 = vmatprep.subr.mxu0 %v1581
    %1709 = vmatpush1.xpose.msra.mxu0 %v1580
    %1710 = vmatprep.subr.mxu0 %v1583
    %1711 = vmatpush1.xpose.msra.mxu0 %v1582
    %1712 = vmatprep.mubr.f32.mxu0 %v75
    %1713 = vmatmul.mubr.f32.gmra.mrb[0].mxu0 %v74
    %v1714 = vpop.f32.mrb[0].mxu0
    %v1715 = vadd.f32 %v72, %v1714
    %v1716 = vpop.f32.mrb[0].mxu0
    %v1717 = vadd.f32 %v73, %v1716
    %1718 = vdwg.mxu0
    %1719 = vst [vmem:[#allocation10] sm:$0xf] %v1715
    %1720 = vst [vmem:[#allocation10 + $0x8] sm:$0xf] %v1717
    %1721 = vrot.lane.b32.xlu0 %v207, 124
    %v1722 = vpop.permute.xlu0 %1721
    %1723 = vrot.lane.b32.xlu0 %v212, 124
    %v1724 = vpop.permute.xlu0 %1723
    %1725 = vrot.lane.b32.xlu0 %v217, 124
    %v1726 = vpop.permute.xlu0 %1725
    %1727 = vrot.lane.b32.xlu0 %v222, 124
    %v1728 = vpop.permute.xlu0 %1727
    %1729 = vrot.lane.b32.xlu0 %v227, 124
    %v1730 = vpop.permute.xlu0 %1729
    %1731 = vrot.lane.b32.xlu0 %v232, 124
    %v1732 = vpop.permute.xlu0 %1731
    %1733 = vrot.lane.b32.xlu0 %v237, 124
    %v1734 = vpop.permute.xlu0 %1733
    %1735 = vrot.lane.b32.xlu0 %v242, 124
    %v1736 = vpop.permute.xlu0 %1735
    %1737 = vrot.lane.b32.xlu0 %v247, 124
    %v1738 = vpop.permute.xlu0 %1737
    %1739 = vrot.lane.b32.xlu0 %v252, 124
    %v1740 = vpop.permute.xlu0 %1739
    %1741 = vrot.lane.b32.xlu0 %v257, 124
    %v1742 = vpop.permute.xlu0 %1741
    %1743 = vrot.lane.b32.xlu0 %v262, 124
    %v1744 = vpop.permute.xlu0 %1743
    %1745 = vrot.lane.b32.xlu0 %v267, 124
    %v1746 = vpop.permute.xlu0 %1745
    %1747 = vrot.lane.b32.xlu0 %v272, 124
    %v1748 = vpop.permute.xlu0 %1747
    %1749 = vrot.lane.b32.xlu0 %v277, 124
    %v1750 = vpop.permute.xlu0 %1749
    %1751 = vrot.lane.b32.xlu0 %v282, 124
    %v1752 = vpop.permute.xlu0 %1751
    %1753 = vrot.lane.b32.xlu0 %v287, 124
    %v1754 = vpop.permute.xlu0 %1753
    %1755 = vrot.lane.b32.xlu0 %v292, 124
    %v1756 = vpop.permute.xlu0 %1755
    %1757 = vrot.lane.b32.xlu0 %v297, 124
    %v1758 = vpop.permute.xlu0 %1757
    %1759 = vrot.lane.b32.xlu0 %v302, 124
    %v1760 = vpop.permute.xlu0 %1759
    %1761 = vrot.lane.b32.xlu0 %v307, 124
    %v1762 = vpop.permute.xlu0 %1761
    %1763 = vrot.lane.b32.xlu0 %v312, 124
    %v1764 = vpop.permute.xlu0 %1763
    %1765 = vrot.lane.b32.xlu0 %v317, 124
    %v1766 = vpop.permute.xlu0 %1765
    %1767 = vrot.lane.b32.xlu0 %v322, 124
    %v1768 = vpop.permute.xlu0 %1767
    %1769 = vrot.lane.b32.xlu0 %v327, 124
    %v1770 = vpop.permute.xlu0 %1769
    %1771 = vrot.lane.b32.xlu0 %v332, 124
    %v1772 = vpop.permute.xlu0 %1771
    %1773 = vrot.lane.b32.xlu0 %v337, 124
    %v1774 = vpop.permute.xlu0 %1773
    %1775 = vrot.lane.b32.xlu0 %v342, 124
    %v1776 = vpop.permute.xlu0 %1775
    %1777 = vrot.lane.b32.xlu0 %v347, 124
    %v1778 = vpop.permute.xlu0 %1777
    %1779 = vrot.lane.b32.xlu0 %v352, 124
    %v1780 = vpop.permute.xlu0 %1779
    %1781 = vrot.lane.b32.xlu0 %v357, 124
    %v1782 = vpop.permute.xlu0 %1781
    %1783 = vrot.lane.b32.xlu0 %v362, 124
    %v1784 = vpop.permute.xlu0 %1783
    %1785 = vrot.lane.b32.xlu0 %v496, 124
    %v1786 = vpop.permute.xlu0 %1785
    %1787 = vrot.lane.b32.xlu0 %v501, 124
    %v1788 = vpop.permute.xlu0 %1787
    %1789 = vrot.lane.b32.xlu0 %v506, 124
    %v1790 = vpop.permute.xlu0 %1789
    %1791 = vrot.lane.b32.xlu0 %v511, 124
    %v1792 = vpop.permute.xlu0 %1791
    %1793 = vrot.lane.b32.xlu0 %v516, 124
    %v1794 = vpop.permute.xlu0 %1793
    %1795 = vrot.lane.b32.xlu0 %v521, 124
    %v1796 = vpop.permute.xlu0 %1795
    %1797 = vrot.lane.b32.xlu0 %v526, 124
    %v1798 = vpop.permute.xlu0 %1797
    %1799 = vrot.lane.b32.xlu0 %v531, 124
    %v1800 = vpop.permute.xlu0 %1799
    %1801 = vrot.lane.b32.xlu0 %v536, 124
    %v1802 = vpop.permute.xlu0 %1801
    %1803 = vrot.lane.b32.xlu0 %v541, 124
    %v1804 = vpop.permute.xlu0 %1803
    %1805 = vrot.lane.b32.xlu0 %v546, 124
    %v1806 = vpop.permute.xlu0 %1805
    %1807 = vrot.lane.b32.xlu0 %v551, 124
    %v1808 = vpop.permute.xlu0 %1807
    %1809 = vrot.lane.b32.xlu0 %v556, 124
    %v1810 = vpop.permute.xlu0 %1809
    %1811 = vrot.lane.b32.xlu0 %v561, 124
    %v1812 = vpop.permute.xlu0 %1811
    %1813 = vrot.lane.b32.xlu0 %v566, 124
    %v1814 = vpop.permute.xlu0 %1813
    %1815 = vrot.lane.b32.xlu0 %v571, 124
    %v1816 = vpop.permute.xlu0 %1815
    %1817 = vrot.lane.b32.xlu0 %v576, 124
    %v1818 = vpop.permute.xlu0 %1817
    %1819 = vrot.lane.b32.xlu0 %v581, 124
    %v1820 = vpop.permute.xlu0 %1819
    %1821 = vrot.lane.b32.xlu0 %v586, 124
    %v1822 = vpop.permute.xlu0 %1821
    %1823 = vrot.lane.b32.xlu0 %v591, 124
    %v1824 = vpop.permute.xlu0 %1823
    %1825 = vrot.lane.b32.xlu0 %v596, 124
    %v1826 = vpop.permute.xlu0 %1825
    %1827 = vrot.lane.b32.xlu0 %v601, 124
    %v1828 = vpop.permute.xlu0 %1827
    %1829 = vrot.lane.b32.xlu0 %v606, 124
    %v1830 = vpop.permute.xlu0 %1829
    %1831 = vrot.lane.b32.xlu0 %v611, 124
    %v1832 = vpop.permute.xlu0 %1831
    %1833 = vrot.lane.b32.xlu0 %v616, 124
    %v1834 = vpop.permute.xlu0 %1833
    %1835 = vrot.lane.b32.xlu0 %v621, 124
    %v1836 = vpop.permute.xlu0 %1835
    %1837 = vrot.lane.b32.xlu0 %v626, 124
    %v1838 = vpop.permute.xlu0 %1837
    %1839 = vrot.lane.b32.xlu0 %v631, 124
    %v1840 = vpop.permute.xlu0 %1839
    %1841 = vrot.lane.b32.xlu0 %v636, 124
    %v1842 = vpop.permute.xlu0 %1841
    %1843 = vrot.lane.b32.xlu0 %v641, 124
    %v1844 = vpop.permute.xlu0 %1843
    %1845 = vrot.lane.b32.xlu0 %v646, 124
    %v1846 = vpop.permute.xlu0 %1845
    %1847 = vrot.lane.b32.xlu0 %v651, 124
    %v1848 = vpop.permute.xlu0 %1847
    %v1849 = vsel %vm654, %v1722, 0
    %v1851 = vsel %vm654, %v1724, 0
    %v1853 = vsel %vm654, %v1726, 0
    %v1855 = vsel %vm654, %v1728, 0
    %v1857 = vsel %vm654, %v1730, 0
    %v1859 = vsel %vm654, %v1732, 0
    %v1861 = vsel %vm654, %v1734, 0
    %v1863 = vsel %vm654, %v1736, 0
    %v1865 = vsel %vm654, %v1738, 0
    %v1867 = vsel %vm654, %v1740, 0
    %v1869 = vsel %vm654, %v1742, 0
    %v1871 = vsel %vm654, %v1744, 0
    %v1873 = vsel %vm654, %v1746, 0
    %v1875 = vsel %vm654, %v1748, 0
    %v1877 = vsel %vm654, %v1750, 0
    %v1879 = vsel %vm654, %v1752, 0
    %v1881 = vsel %vm654, %v1754, 0
    %v1883 = vsel %vm654, %v1756, 0
    %v1885 = vsel %vm654, %v1758, 0
    %v1887 = vsel %vm654, %v1760, 0
    %v1889 = vsel %vm654, %v1762, 0
    %v1891 = vsel %vm654, %v1764, 0
    %v1893 = vsel %vm654, %v1766, 0
    %v1895 = vsel %vm654, %v1768, 0
    %v1897 = vsel %vm654, %v1770, 0
    %v1899 = vsel %vm654, %v1772, 0
    %v1901 = vsel %vm654, %v1774, 0
    %v1903 = vsel %vm654, %v1776, 0
    %v1905 = vsel %vm654, %v1778, 0
    %v1907 = vsel %vm654, %v1780, 0
    %v1909 = vsel %vm654, %v1782, 0
    %v1911 = vsel %vm654, %v1784, 0
    %v1913 = vsel %vm654, %v1786, 0
    %v1915 = vsel %vm654, %v1788, 0
    %v1917 = vsel %vm654, %v1790, 0
    %v1919 = vsel %vm654, %v1792, 0
    %v1921 = vsel %vm654, %v1794, 0
    %v1923 = vsel %vm654, %v1796, 0
    %v1925 = vsel %vm654, %v1798, 0
    %v1927 = vsel %vm654, %v1800, 0
    %v1929 = vsel %vm654, %v1802, 0
    %v1931 = vsel %vm654, %v1804, 0
    %v1933 = vsel %vm654, %v1806, 0
    %v1935 = vsel %vm654, %v1808, 0
    %v1937 = vsel %vm654, %v1810, 0
    %v1939 = vsel %vm654, %v1812, 0
    %v1941 = vsel %vm654, %v1814, 0
    %v1943 = vsel %vm654, %v1816, 0
    %v1945 = vsel %vm654, %v1818, 0
    %v1947 = vsel %vm654, %v1820, 0
    %v1949 = vsel %vm654, %v1822, 0
    %v1951 = vsel %vm654, %v1824, 0
    %v1953 = vsel %vm654, %v1826, 0
    %v1955 = vsel %vm654, %v1828, 0
    %v1957 = vsel %vm654, %v1830, 0
    %v1959 = vsel %vm654, %v1832, 0
    %v1961 = vsel %vm654, %v1834, 0
    %v1963 = vsel %vm654, %v1836, 0
    %v1965 = vsel %vm654, %v1838, 0
    %v1967 = vsel %vm654, %v1840, 0
    %v1969 = vsel %vm654, %v1842, 0
    %v1971 = vsel %vm654, %v1844, 0
    %v1973 = vsel %vm654, %v1846, 0
    %v1975 = vsel %vm654, %v1848, 0
    %1977 = vmatprep.subr.mxu0 0.0
    %1978 = vmatpush1.xpose.msra.mxu0 %v1913
    %1979 = vmatprep.subr.mxu0 0.0
    %1980 = vmatpush1.xpose.msra.mxu0 %v1915
    %1981 = vmatprep.subr.mxu0 0.0
    %1982 = vmatpush1.xpose.msra.mxu0 %v1917
    %1983 = vmatprep.subr.mxu0 0.0
    %1984 = vmatpush1.xpose.msra.mxu0 %v1919
    %1985 = vmatprep.subr.mxu0 0.0
    %1986 = vmatpush1.xpose.msra.mxu0 %v1921
    %1987 = vmatprep.subr.mxu0 0.0
    %1988 = vmatpush1.xpose.msra.mxu0 %v1923
    %1989 = vmatprep.subr.mxu0 0.0
    %1990 = vmatpush1.xpose.msra.mxu0 %v1925
    %1991 = vmatprep.subr.mxu0 0.0
    %1992 = vmatpush1.xpose.msra.mxu0 %v1927
    %1993 = vmatprep.subr.mxu0 0.0
    %1994 = vmatpush1.xpose.msra.mxu0 %v1929
    %1995 = vmatprep.subr.mxu0 0.0
    %1996 = vmatpush1.xpose.msra.mxu0 %v1931
    %1997 = vmatprep.subr.mxu0 0.0
    %1998 = vmatpush1.xpose.msra.mxu0 %v1933
    %1999 = vmatprep.subr.mxu0 0.0
    %2000 = vmatpush1.xpose.msra.mxu0 %v1935
    %2001 = vmatprep.subr.mxu0 0.0
    %2002 = vmatpush1.xpose.msra.mxu0 %v1937
    %2003 = vmatprep.subr.mxu0 0.0
    %2004 = vmatpush1.xpose.msra.mxu0 %v1939
    %2005 = vmatprep.subr.mxu0 0.0
    %2006 = vmatpush1.xpose.msra.mxu0 %v1941
    %2007 = vmatprep.subr.mxu0 0.0
    %2008 = vmatpush1.xpose.msra.mxu0 %v1943
    %2009 = vmatprep.subr.mxu0 0.0
    %2010 = vmatpush1.xpose.msra.mxu0 %v1945
    %2011 = vmatprep.subr.mxu0 0.0
    %2012 = vmatpush1.xpose.msra.mxu0 %v1947
    %2013 = vmatprep.subr.mxu0 0.0
    %2014 = vmatpush1.xpose.msra.mxu0 %v1949
    %2015 = vmatprep.subr.mxu0 0.0
    %2016 = vmatpush1.xpose.msra.mxu0 %v1951
    %2017 = vmatprep.subr.mxu0 0.0
    %2018 = vmatpush1.xpose.msra.mxu0 %v1953
    %2019 = vmatprep.subr.mxu0 0.0
    %2020 = vmatpush1.xpose.msra.mxu0 %v1955
    %2021 = vmatprep.subr.mxu0 0.0
    %2022 = vmatpush1.xpose.msra.mxu0 %v1957
    %2023 = vmatprep.subr.mxu0 0.0
    %2024 = vmatpush1.xpose.msra.mxu0 %v1959
    %2025 = vmatprep.subr.mxu0 0.0
    %2026 = vmatpush1.xpose.msra.mxu0 %v1961
    %2027 = vmatprep.subr.mxu0 0.0
    %2028 = vmatpush1.xpose.msra.mxu0 %v1963
    %2029 = vmatprep.subr.mxu0 0.0
    %2030 = vmatpush1.xpose.msra.mxu0 %v1965
    %2031 = vmatprep.subr.mxu0 0.0
    %2032 = vmatpush1.xpose.msra.mxu0 %v1967
    %2033 = vmatprep.subr.mxu0 0.0
    %2034 = vmatpush1.xpose.msra.mxu0 %v1969
    %2035 = vmatprep.subr.mxu0 0.0
    %2036 = vmatpush1.xpose.msra.mxu0 %v1971
    %2037 = vmatprep.subr.mxu0 0.0
    %2038 = vmatpush1.xpose.msra.mxu0 %v1973
    %2039 = vmatprep.subr.mxu0 0.0
    %2040 = vmatpush1.xpose.msra.mxu0 %v1975
    %2041 = vmatprep.mubr.f32.mxu0 0.0
    %2042 = vmatmul.mubr.f32.gmra.mrb[0].mxu0 %v1849
    %v2043 = vpop.f32.mrb[0].mxu0
    %v2044 = vadd.f32 0.0, %v2043
    %v2045 = vpop.f32.mrb[0].mxu0
    %v2046 = vadd.f32 0.0, %v2045
    %2047 = vmatprep.mubr.f32.mxu0 0.0
    %2048 = vmatmul.mubr.f32.gmra.mrb[0].mxu0 %v1851
    %v2049 = vpop.f32.mrb[0].mxu0
    %v2050 = vadd.f32 0.0, %v2049
    %v2051 = vpop.f32.mrb[0].mxu0
    %v2052 = vadd.f32 0.0, %v2051
    %2053 = vmatprep.mubr.f32.mxu0 0.0
    %2054 = vmatmul.mubr.f32.gmra.mrb[0].mxu0 %v1853
    %v2055 = vpop.f32.mrb[0].mxu0
    %v2056 = vadd.f32 0.0, %v2055
    %v2057 = vpop.f32.mrb[0].mxu0
    %v2058 = vadd.f32 0.0, %v2057
    %2059 = vmatprep.mubr.f32.mxu0 0.0
    %2060 = vmatmul.mubr.f32.gmra.mrb[0].mxu0 %v1855
    %v2061 = vpop.f32.mrb[0].mxu0
    %v2062 = vadd.f32 0.0, %v2061
    %v2063 = vpop.f32.mrb[0].mxu0
    %v2064 = vadd.f32 0.0, %v2063
    %2065 = vmatprep.mubr.f32.mxu0 0.0
    %2066 = vmatmul.mubr.f32.gmra.mrb[0].mxu0 %v1857
    %v2067 = vpop.f32.mrb[0].mxu0
    %v2068 = vadd.f32 0.0, %v2067
    %v2069 = vpop.f32.mrb[0].mxu0
    %v2070 = vadd.f32 0.0, %v2069
    %2071 = vmatprep.mubr.f32.mxu0 0.0
    %2072 = vmatmul.mubr.f32.gmra.mrb[0].mxu0 %v1859
    %v2073 = vpop.f32.mrb[0].mxu0
    %v2074 = vadd.f32 0.0, %v2073
    %v2075 = vpop.f32.mrb[0].mxu0
    %v2076 = vadd.f32 0.0, %v2075
    %2077 = vmatprep.mubr.f32.mxu0 0.0
    %2078 = vmatmul.mubr.f32.gmra.mrb[0].mxu0 %v1861
    %v2079 = vpop.f32.mrb[0].mxu0
    %v2080 = vadd.f32 0.0, %v2079
    %v2081 = vpop.f32.mrb[0].mxu0
    %v2082 = vadd.f32 0.0, %v2081
    %2083 = vmatprep.mubr.f32.mxu0 0.0
    %2084 = vmatmul.mubr.f32.gmra.mrb[0].mxu0 %v1863
    %v2085 = vpop.f32.mrb[0].mxu0
    %v2086 = vadd.f32 0.0, %v2085
    %v2087 = vpop.f32.mrb[0].mxu0
    %v2088 = vadd.f32 0.0, %v2087
    %2089 = vmatprep.mubr.f32.mxu0 0.0
    %2090 = vmatmul.mubr.f32.gmra.mrb[0].mxu0 %v1865
    %v2091 = vpop.f32.mrb[0].mxu0
    %v2092 = vadd.f32 0.0, %v2091
    %v2093 = vpop.f32.mrb[0].mxu0
    %v2094 = vadd.f32 0.0, %v2093
    %2095 = vmatprep.mubr.f32.mxu0 0.0
    %2096 = vmatmul.mubr.f32.gmra.mrb[0].mxu0 %v1867
    %v2097 = vpop.f32.mrb[0].mxu0
    %v2098 = vadd.f32 0.0, %v2097
    %v2099 = vpop.f32.mrb[0].mxu0
    %v2100 = vadd.f32 0.0, %v2099
    %2101 = vmatprep.mubr.f32.mxu0 0.0
    %2102 = vmatmul.mubr.f32.gmra.mrb[0].mxu0 %v1869
    %v2103 = vpop.f32.mrb[0].mxu0
    %v2104 = vadd.f32 0.0, %v2103
    %v2105 = vpop.f32.mrb[0].mxu0
    %v2106 = vadd.f32 0.0, %v2105
    %2107 = vmatprep.mubr.f32.mxu0 0.0
    %2108 = vmatmul.mubr.f32.gmra.mrb[0].mxu0 %v1871
    %v2109 = vpop.f32.mrb[0].mxu0
    %v2110 = vadd.f32 0.0, %v2109
    %v2111 = vpop.f32.mrb[0].mxu0
    %v2112 = vadd.f32 0.0, %v2111
    %2113 = vmatprep.mubr.f32.mxu0 0.0
    %2114 = vmatmul.mubr.f32.gmra.mrb[0].mxu0 %v1873
    %v2115 = vpop.f32.mrb[0].mxu0
    %v2116 = vadd.f32 0.0, %v2115
    %v2117 = vpop.f32.mrb[0].mxu0
    %v2118 = vadd.f32 0.0, %v2117
    %2119 = vmatprep.mubr.f32.mxu0 0.0
    %2120 = vmatmul.mubr.f32.gmra.mrb[0].mxu0 %v1875
    %v2121 = vpop.f32.mrb[0].mxu0
    %v2122 = vadd.f32 0.0, %v2121
    %v2123 = vpop.f32.mrb[0].mxu0
    %v2124 = vadd.f32 0.0, %v2123
    %2125 = vmatprep.mubr.f32.mxu0 0.0
    %2126 = vmatmul.mubr.f32.gmra.mrb[0].mxu0 %v1877
    %v2127 = vpop.f32.mrb[0].mxu0
    %v2128 = vadd.f32 0.0, %v2127
    %v2129 = vpop.f32.mrb[0].mxu0
    %v2130 = vadd.f32 0.0, %v2129
    %2131 = vmatprep.mubr.f32.mxu0 0.0
    %2132 = vmatmul.mubr.f32.gmra.mrb[0].mxu0 %v1879
    %v2133 = vpop.f32.mrb[0].mxu0
    %v2134 = vadd.f32 0.0, %v2133
    %v2135 = vpop.f32.mrb[0].mxu0
    %v2136 = vadd.f32 0.0, %v2135
    %2137 = vmatprep.mubr.f32.mxu0 0.0
    %2138 = vmatmul.mubr.f32.gmra.mrb[0].mxu0 %v1881
    %v2139 = vpop.f32.mrb[0].mxu0
    %v2140 = vadd.f32 0.0, %v2139
    %v2141 = vpop.f32.mrb[0].mxu0
    %v2142 = vadd.f32 0.0, %v2141
    %2143 = vmatprep.mubr.f32.mxu0 0.0
    %2144 = vmatmul.mubr.f32.gmra.mrb[0].mxu0 %v1883
    %v2145 = vpop.f32.mrb[0].mxu0
    %v2146 = vadd.f32 0.0, %v2145
    %v2147 = vpop.f32.mrb[0].mxu0
    %v2148 = vadd.f32 0.0, %v2147
    %2149 = vmatprep.mubr.f32.mxu0 0.0
    %2150 = vmatmul.mubr.f32.gmra.mrb[0].mxu0 %v1885
    %v2151 = vpop.f32.mrb[0].mxu0
    %v2152 = vadd.f32 0.0, %v2151
    %v2153 = vpop.f32.mrb[0].mxu0
    %v2154 = vadd.f32 0.0, %v2153
    %2155 = vmatprep.mubr.f32.mxu0 0.0
    %2156 = vmatmul.mubr.f32.gmra.mrb[0].mxu0 %v1887
    %v2157 = vpop.f32.mrb[0].mxu0
    %v2158 = vadd.f32 0.0, %v2157
    %v2159 = vpop.f32.mrb[0].mxu0
    %v2160 = vadd.f32 0.0, %v2159
    %2161 = vmatprep.mubr.f32.mxu0 0.0
    %2162 = vmatmul.mubr.f32.gmra.mrb[0].mxu0 %v1889
    %v2163 = vpop.f32.mrb[0].mxu0
    %v2164 = vadd.f32 0.0, %v2163
    %v2165 = vpop.f32.mrb[0].mxu0
    %v2166 = vadd.f32 0.0, %v2165
    %2167 = vmatprep.mubr.f32.mxu0 0.0
    %2168 = vmatmul.mubr.f32.gmra.mrb[0].mxu0 %v1891
    %v2169 = vpop.f32.mrb[0].mxu0
    %v2170 = vadd.f32 0.0, %v2169
    %v2171 = vpop.f32.mrb[0].mxu0
    %v2172 = vadd.f32 0.0, %v2171
    %2173 = vmatprep.mubr.f32.mxu0 0.0
    %2174 = vmatmul.mubr.f32.gmra.mrb[0].mxu0 %v1893
    %v2175 = vpop.f32.mrb[0].mxu0
    %v2176 = vadd.f32 0.0, %v2175
    %v2177 = vpop.f32.mrb[0].mxu0
    %v2178 = vadd.f32 0.0, %v2177
    %2179 = vmatprep.mubr.f32.mxu0 0.0
    %2180 = vmatmul.mubr.f32.gmra.mrb[0].mxu0 %v1895
    %v2181 = vpop.f32.mrb[0].mxu0
    %v2182 = vadd.f32 0.0, %v2181
    %v2183 = vpop.f32.mrb[0].mxu0
    %v2184 = vadd.f32 0.0, %v2183
    %2185 = vmatprep.mubr.f32.mxu0 0.0
    %2186 = vmatmul.mubr.f32.gmra.mrb[0].mxu0 %v1897
    %v2187 = vpop.f32.mrb[0].mxu0
    %v2188 = vadd.f32 0.0, %v2187
    %v2189 = vpop.f32.mrb[0].mxu0
    %v2190 = vadd.f32 0.0, %v2189
    %2191 = vmatprep.mubr.f32.mxu0 0.0
    %2192 = vmatmul.mubr.f32.gmra.mrb[0].mxu0 %v1899
    %v2193 = vpop.f32.mrb[0].mxu0
    %v2194 = vadd.f32 0.0, %v2193
    %v2195 = vpop.f32.mrb[0].mxu0
    %v2196 = vadd.f32 0.0, %v2195
    %2197 = vmatprep.mubr.f32.mxu0 0.0
    %2198 = vmatmul.mubr.f32.gmra.mrb[0].mxu0 %v1901
    %v2199 = vpop.f32.mrb[0].mxu0
    %v2200 = vadd.f32 0.0, %v2199
    %v2201 = vpop.f32.mrb[0].mxu0
    %v2202 = vadd.f32 0.0, %v2201
    %2203 = vmatprep.mubr.f32.mxu0 0.0
    %2204 = vmatmul.mubr.f32.gmra.mrb[0].mxu0 %v1903
    %v2205 = vpop.f32.mrb[0].mxu0
    %v2206 = vadd.f32 0.0, %v2205
    %v2207 = vpop.f32.mrb[0].mxu0
    %v2208 = vadd.f32 0.0, %v2207
    %2209 = vmatprep.mubr.f32.mxu0 0.0
    %2210 = vmatmul.mubr.f32.gmra.mrb[0].mxu0 %v1905
    %v2211 = vpop.f32.mrb[0].mxu0
    %v2212 = vadd.f32 0.0, %v2211
    %v2213 = vpop.f32.mrb[0].mxu0
    %v2214 = vadd.f32 0.0, %v2213
    %2215 = vmatprep.mubr.f32.mxu0 0.0
    %2216 = vmatmul.mubr.f32.gmra.mrb[0].mxu0 %v1907
    %v2217 = vpop.f32.mrb[0].mxu0
    %v2218 = vadd.f32 0.0, %v2217
    %v2219 = vpop.f32.mrb[0].mxu0
    %v2220 = vadd.f32 0.0, %v2219
    %2221 = vmatprep.mubr.f32.mxu0 0.0
    %2222 = vmatmul.mubr.f32.gmra.mrb[0].mxu0 %v1909
    %v2223 = vpop.f32.mrb[0].mxu0
    %v2224 = vadd.f32 0.0, %v2223
    %v2225 = vpop.f32.mrb[0].mxu0
    %v2226 = vadd.f32 0.0, %v2225
    %2227 = vmatprep.mubr.f32.mxu0 0.0
    %2228 = vmatmul.mubr.f32.gmra.mrb[0].mxu0 %v1911
    %v2229 = vpop.f32.mrb[0].mxu0
    %v2230 = vadd.f32 0.0, %v2229
    %v2231 = vpop.f32.mrb[0].mxu0
    %v2232 = vadd.f32 0.0, %v2231
    %2233 = vdwg.mxu0
    %v2234 = vmax.f32 %v2044, %v2046
    %2235 = vmax.xlane.f32.xlu0 %v2234
    %v2236 = vpop.xlane.xlu0 %2235
    %v2237 = vmax.f32 %v2050, %v2052
    %2238 = vmax.xlane.f32.xlu0 %v2237
    %v2239 = vpop.xlane.xlu0 %2238
    %v2240 = vmax.f32 %v2056, %v2058
    %2241 = vmax.xlane.f32.xlu0 %v2240
    %v2242 = vpop.xlane.xlu0 %2241
    %v2243 = vmax.f32 %v2062, %v2064
    %2244 = vmax.xlane.f32.xlu0 %v2243
    %v2245 = vpop.xlane.xlu0 %2244
    %v2246 = vmax.f32 %v2068, %v2070
    %2247 = vmax.xlane.f32.xlu0 %v2246
    %v2248 = vpop.xlane.xlu0 %2247
    %v2249 = vmax.f32 %v2074, %v2076
    %2250 = vmax.xlane.f32.xlu0 %v2249
    %v2251 = vpop.xlane.xlu0 %2250
    %v2252 = vmax.f32 %v2080, %v2082
    %2253 = vmax.xlane.f32.xlu0 %v2252
    %v2254 = vpop.xlane.xlu0 %2253
    %v2255 = vmax.f32 %v2086, %v2088
    %2256 = vmax.xlane.f32.xlu0 %v2255
    %v2257 = vpop.xlane.xlu0 %2256
    %v2258 = vmax.f32 %v2092, %v2094
    %2259 = vmax.xlane.f32.xlu0 %v2258
    %v2260 = vpop.xlane.xlu0 %2259
    %v2261 = vmax.f32 %v2098, %v2100
    %2262 = vmax.xlane.f32.xlu0 %v2261
    %v2263 = vpop.xlane.xlu0 %2262
    %v2264 = vmax.f32 %v2104, %v2106
    %2265 = vmax.xlane.f32.xlu0 %v2264
    %v2266 = vpop.xlane.xlu0 %2265
    %v2267 = vmax.f32 %v2110, %v2112
    %2268 = vmax.xlane.f32.xlu0 %v2267
    %v2269 = vpop.xlane.xlu0 %2268
    %v2270 = vmax.f32 %v2116, %v2118
    %2271 = vmax.xlane.f32.xlu0 %v2270
    %v2272 = vpop.xlane.xlu0 %2271
    %v2273 = vmax.f32 %v2122, %v2124
    %2274 = vmax.xlane.f32.xlu0 %v2273
    %v2275 = vpop.xlane.xlu0 %2274
    %v2276 = vmax.f32 %v2128, %v2130
    %2277 = vmax.xlane.f32.xlu0 %v2276
    %v2278 = vpop.xlane.xlu0 %2277
    %v2279 = vmax.f32 %v2134, %v2136
    %2280 = vmax.xlane.f32.xlu0 %v2279
    %v2281 = vpop.xlane.xlu0 %2280
    %v2282 = vmax.f32 %v2140, %v2142
    %2283 = vmax.xlane.f32.xlu0 %v2282
    %v2284 = vpop.xlane.xlu0 %2283
    %v2285 = vmax.f32 %v2146, %v2148
    %2286 = vmax.xlane.f32.xlu0 %v2285
    %v2287 = vpop.xlane.xlu0 %2286
    %v2288 = vmax.f32 %v2152, %v2154
    %2289 = vmax.xlane.f32.xlu0 %v2288
    %v2290 = vpop.xlane.xlu0 %2289
    %v2291 = vmax.f32 %v2158, %v2160
    %2292 = vmax.xlane.f32.xlu0 %v2291
    %v2293 = vpop.xlane.xlu0 %2292
    %v2294 = vmax.f32 %v2164, %v2166
    %2295 = vmax.xlane.f32.xlu0 %v2294
    %v2296 = vpop.xlane.xlu0 %2295
    %v2297 = vmax.f32 %v2170, %v2172
    %2298 = vmax.xlane.f32.xlu0 %v2297
    %v2299 = vpop.xlane.xlu0 %2298
    %v2300 = vmax.f32 %v2176, %v2178
    %2301 = vmax.xlane.f32.xlu0 %v2300
    %v2302 = vpop.xlane.xlu0 %2301
    %v2303 = vmax.f32 %v2182, %v2184
    %2304 = vmax.xlane.f32.xlu0 %v2303
    %v2305 = vpop.xlane.xlu0 %2304
    %v2306 = vmax.f32 %v2188, %v2190
    %2307 = vmax.xlane.f32.xlu0 %v2306
    %v2308 = vpop.xlane.xlu0 %2307
    %v2309 = vmax.f32 %v2194, %v2196
    %2310 = vmax.xlane.f32.xlu0 %v2309
    %v2311 = vpop.xlane.xlu0 %2310
    %v2312 = vmax.f32 %v2200, %v2202
    %2313 = vmax.xlane.f32.xlu0 %v2312
    %v2314 = vpop.xlane.xlu0 %2313
    %v2315 = vmax.f32 %v2206, %v2208
    %2316 = vmax.xlane.f32.xlu0 %v2315
    %v2317 = vpop.xlane.xlu0 %2316
    %v2318 = vmax.f32 %v2212, %v2214
    %2319 = vmax.xlane.f32.xlu0 %v2318
    %v2320 = vpop.xlane.xlu0 %2319
    %v2321 = vmax.f32 %v2218, %v2220
    %2322 = vmax.xlane.f32.xlu0 %v2321
    %v2323 = vpop.xlane.xlu0 %2322
    %v2324 = vmax.f32 %v2224, %v2226
    %2325 = vmax.xlane.f32.xlu0 %v2324
    %v2326 = vpop.xlane.xlu0 %2325
    %v2327 = vmax.f32 %v2230, %v2232
    %2328 = vmax.xlane.f32.xlu0 %v2327
    %v2329 = vpop.xlane.xlu0 %2328
    %v2330 = vsub.f32 %v2044, %v2236
    %v2331 = vsub.f32 %v2046, %v2236
    %v2332 = vsub.f32 %v2050, %v2239
    %v2333 = vsub.f32 %v2052, %v2239
    %v2334 = vsub.f32 %v2056, %v2242
    %v2335 = vsub.f32 %v2058, %v2242
    %v2336 = vsub.f32 %v2062, %v2245
    %v2337 = vsub.f32 %v2064, %v2245
    %v2338 = vsub.f32 %v2068, %v2248
    %v2339 = vsub.f32 %v2070, %v2248
    %v2340 = vsub.f32 %v2074, %v2251
    %v2341 = vsub.f32 %v2076, %v2251
    %v2342 = vsub.f32 %v2080, %v2254
    %v2343 = vsub.f32 %v2082, %v2254
    %v2344 = vsub.f32 %v2086, %v2257
    %v2345 = vsub.f32 %v2088, %v2257
    %v2346 = vsub.f32 %v2092, %v2260
    %v2347 = vsub.f32 %v2094, %v2260
    %v2348 = vsub.f32 %v2098, %v2263
    %v2349 = vsub.f32 %v2100, %v2263
    %v2350 = vsub.f32 %v2104, %v2266
    %v2351 = vsub.f32 %v2106, %v2266
    %v2352 = vsub.f32 %v2110, %v2269
    %v2353 = vsub.f32 %v2112, %v2269
    %v2354 = vsub.f32 %v2116, %v2272
    %v2355 = vsub.f32 %v2118, %v2272
    %v2356 = vsub.f32 %v2122, %v2275
    %v2357 = vsub.f32 %v2124, %v2275
    %v2358 = vsub.f32 %v2128, %v2278
    %v2359 = vsub.f32 %v2130, %v2278
    %v2360 = vsub.f32 %v2134, %v2281
    %v2361 = vsub.f32 %v2136, %v2281
    %v2362 = vsub.f32 %v2140, %v2284
    %v2363 = vsub.f32 %v2142, %v2284
    %v2364 = vsub.f32 %v2146, %v2287
    %v2365 = vsub.f32 %v2148, %v2287
    %v2366 = vsub.f32 %v2152, %v2290
    %v2367 = vsub.f32 %v2154, %v2290
    %v2368 = vsub.f32 %v2158, %v2293
    %v2369 = vsub.f32 %v2160, %v2293
    %v2370 = vsub.f32 %v2164, %v2296
    %v2371 = vsub.f32 %v2166, %v2296
    %v2372 = vsub.f32 %v2170, %v2299
    %v2373 = vsub.f32 %v2172, %v2299
    %v2374 = vsub.f32 %v2176, %v2302
    %v2375 = vsub.f32 %v2178, %v2302
    %v2376 = vsub.f32 %v2182, %v2305
    %v2377 = vsub.f32 %v2184, %v2305
    %v2378 = vsub.f32 %v2188, %v2308
    %v2379 = vsub.f32 %v2190, %v2308
    %v2380 = vsub.f32 %v2194, %v2311
    %v2381 = vsub.f32 %v2196, %v2311
    %v2382 = vsub.f32 %v2200, %v2314
    %v2383 = vsub.f32 %v2202, %v2314
    %v2384 = vsub.f32 %v2206, %v2317
    %v2385 = vsub.f32 %v2208, %v2317
    %v2386 = vsub.f32 %v2212, %v2320
    %v2387 = vsub.f32 %v2214, %v2320
    %v2388 = vsub.f32 %v2218, %v2323
    %v2389 = vsub.f32 %v2220, %v2323
    %v2390 = vsub.f32 %v2224, %v2326
    %v2391 = vsub.f32 %v2226, %v2326
    %v2392 = vsub.f32 %v2230, %v2329
    %v2393 = vsub.f32 %v2232, %v2329
    %v2394 = vmul.f32 %v2330, 1.442695
    %v2395 = vpow.pop %v2394
    %v2396 = vmul.f32 %v2331, 1.442695
    %v2397 = vpow.pop %v2396
    %v2398 = vmul.f32 %v2332, 1.442695
    %v2399 = vpow.pop %v2398
    %v2400 = vmul.f32 %v2333, 1.442695
    %v2401 = vpow.pop %v2400
    %v2402 = vmul.f32 %v2334, 1.442695
    %v2403 = vpow.pop %v2402
    %v2404 = vmul.f32 %v2335, 1.442695
    %v2405 = vpow.pop %v2404
    %v2406 = vmul.f32 %v2336, 1.442695
    %v2407 = vpow.pop %v2406
    %v2408 = vmul.f32 %v2337, 1.442695
    %v2409 = vpow.pop %v2408
    %v2410 = vmul.f32 %v2338, 1.442695
    %v2411 = vpow.pop %v2410
    %v2412 = vmul.f32 %v2339, 1.442695
    %v2413 = vpow.pop %v2412
    %v2414 = vmul.f32 %v2340, 1.442695
    %v2415 = vpow.pop %v2414
    %v2416 = vmul.f32 %v2341, 1.442695
    %v2417 = vpow.pop %v2416
    %v2418 = vmul.f32 %v2342, 1.442695
    %v2419 = vpow.pop %v2418
    %v2420 = vmul.f32 %v2343, 1.442695
    %v2421 = vpow.pop %v2420
    %v2422 = vmul.f32 %v2344, 1.442695
    %v2423 = vpow.pop %v2422
    %v2424 = vmul.f32 %v2345, 1.442695
    %v2425 = vpow.pop %v2424
    %v2426 = vmul.f32 %v2346, 1.442695
    %v2427 = vpow.pop %v2426
    %v2428 = vmul.f32 %v2347, 1.442695
    %v2429 = vpow.pop %v2428
    %v2430 = vmul.f32 %v2348, 1.442695
    %v2431 = vpow.pop %v2430
    %v2432 = vmul.f32 %v2349, 1.442695
    %v2433 = vpow.pop %v2432
    %v2434 = vmul.f32 %v2350, 1.442695
    %v2435 = vpow.pop %v2434
    %v2436 = vmul.f32 %v2351, 1.442695
    %v2437 = vpow.pop %v2436
    %v2438 = vmul.f32 %v2352, 1.442695
    %v2439 = vpow.pop %v2438
    %v2440 = vmul.f32 %v2353, 1.442695
    %v2441 = vpow.pop %v2440
    %v2442 = vmul.f32 %v2354, 1.442695
    %v2443 = vpow.pop %v2442
    %v2444 = vmul.f32 %v2355, 1.442695
    %v2445 = vpow.pop %v2444
    %v2446 = vmul.f32 %v2356, 1.442695
    %v2447 = vpow.pop %v2446
    %v2448 = vmul.f32 %v2357, 1.442695
    %v2449 = vpow.pop %v2448
    %v2450 = vmul.f32 %v2358, 1.442695
    %v2451 = vpow.pop %v2450
    %v2452 = vmul.f32 %v2359, 1.442695
    %v2453 = vpow.pop %v2452
    %v2454 = vmul.f32 %v2360, 1.442695
    %v2455 = vpow.pop %v2454
    %v2456 = vmul.f32 %v2361, 1.442695
    %v2457 = vpow.pop %v2456
    %v2458 = vmul.f32 %v2362, 1.442695
    %v2459 = vpow.pop %v2458
    %v2460 = vmul.f32 %v2363, 1.442695
    %v2461 = vpow.pop %v2460
    %v2462 = vmul.f32 %v2364, 1.442695
    %v2463 = vpow.pop %v2462
    %v2464 = vmul.f32 %v2365, 1.442695
    %v2465 = vpow.pop %v2464
    %v2466 = vmul.f32 %v2366, 1.442695
    %v2467 = vpow.pop %v2466
    %v2468 = vmul.f32 %v2367, 1.442695
    %v2469 = vpow.pop %v2468
    %v2470 = vmul.f32 %v2368, 1.442695
    %v2471 = vpow.pop %v2470
    %v2472 = vmul.f32 %v2369, 1.442695
    %v2473 = vpow.pop %v2472
    %v2474 = vmul.f32 %v2370, 1.442695
    %v2475 = vpow.pop %v2474
    %v2476 = vmul.f32 %v2371, 1.442695
    %v2477 = vpow.pop %v2476
    %v2478 = vmul.f32 %v2372, 1.442695
    %v2479 = vpow.pop %v2478
    %v2480 = vmul.f32 %v2373, 1.442695
    %v2481 = vpow.pop %v2480
    %v2482 = vmul.f32 %v2374, 1.442695
    %v2483 = vpow.pop %v2482
    %v2484 = vmul.f32 %v2375, 1.442695
    %v2485 = vpow.pop %v2484
    %v2486 = vmul.f32 %v2376, 1.442695
    %v2487 = vpow.pop %v2486
    %v2488 = vmul.f32 %v2377, 1.442695
    %v2489 = vpow.pop %v2488
    %v2490 = vmul.f32 %v2378, 1.442695
    %v2491 = vpow.pop %v2490
    %v2492 = vmul.f32 %v2379, 1.442695
    %v2493 = vpow.pop %v2492
    %v2494 = vmul.f32 %v2380, 1.442695
    %v2495 = vpow.pop %v2494
    %v2496 = vmul.f32 %v2381, 1.442695
    %v2497 = vpow.pop %v2496
    %v2498 = vmul.f32 %v2382, 1.442695
    %v2499 = vpow.pop %v2498
    %v2500 = vmul.f32 %v2383, 1.442695
    %v2501 = vpow.pop %v2500
    %v2502 = vmul.f32 %v2384, 1.442695
    %v2503 = vpow.pop %v2502
    %v2504 = vmul.f32 %v2385, 1.442695
    %v2505 = vpow.pop %v2504
    %v2506 = vmul.f32 %v2386, 1.442695
    %v2507 = vpow.pop %v2506
    %v2508 = vmul.f32 %v2387, 1.442695
    %v2509 = vpow.pop %v2508
    %v2510 = vmul.f32 %v2388, 1.442695
    %v2511 = vpow.pop %v2510
    %v2512 = vmul.f32 %v2389, 1.442695
    %v2513 = vpow.pop %v2512
    %v2514 = vmul.f32 %v2390, 1.442695
    %v2515 = vpow.pop %v2514
    %v2516 = vmul.f32 %v2391, 1.442695
    %v2517 = vpow.pop %v2516
    %v2518 = vmul.f32 %v2392, 1.442695
    %v2519 = vpow.pop %v2518
    %v2520 = vmul.f32 %v2393, 1.442695
    %v2521 = vpow.pop %v2520
    %v2522 = vadd.f32 %v2395, %v2397
    %2523 = vadd.xlane.f32.xlu0 %v2522
    %v2524 = vpop.xlane.xlu0 %2523
    %v2525 = vadd.f32 %v2399, %v2401
    %2526 = vadd.xlane.f32.xlu0 %v2525
    %v2527 = vpop.xlane.xlu0 %2526
    %v2528 = vadd.f32 %v2403, %v2405
    %2529 = vadd.xlane.f32.xlu0 %v2528
    %v2530 = vpop.xlane.xlu0 %2529
    %v2531 = vadd.f32 %v2407, %v2409
    %2532 = vadd.xlane.f32.xlu0 %v2531
    %v2533 = vpop.xlane.xlu0 %2532
    %v2534 = vadd.f32 %v2411, %v2413
    %2535 = vadd.xlane.f32.xlu0 %v2534
    %v2536 = vpop.xlane.xlu0 %2535
    %v2537 = vadd.f32 %v2415, %v2417
    %2538 = vadd.xlane.f32.xlu0 %v2537
    %v2539 = vpop.xlane.xlu0 %2538
    %v2540 = vadd.f32 %v2419, %v2421
    %2541 = vadd.xlane.f32.xlu0 %v2540
    %v2542 = vpop.xlane.xlu0 %2541
    %v2543 = vadd.f32 %v2423, %v2425
    %2544 = vadd.xlane.f32.xlu0 %v2543
    %v2545 = vpop.xlane.xlu0 %2544
    %v2546 = vadd.f32 %v2427, %v2429
    %2547 = vadd.xlane.f32.xlu0 %v2546
    %v2548 = vpop.xlane.xlu0 %2547
    %v2549 = vadd.f32 %v2431, %v2433
    %2550 = vadd.xlane.f32.xlu0 %v2549
    %v2551 = vpop.xlane.xlu0 %2550
    %v2552 = vadd.f32 %v2435, %v2437
    %2553 = vadd.xlane.f32.xlu0 %v2552
    %v2554 = vpop.xlane.xlu0 %2553
    %v2555 = vadd.f32 %v2439, %v2441
    %2556 = vadd.xlane.f32.xlu0 %v2555
    %v2557 = vpop.xlane.xlu0 %2556
    %v2558 = vadd.f32 %v2443, %v2445
    %2559 = vadd.xlane.f32.xlu0 %v2558
    %v2560 = vpop.xlane.xlu0 %2559
    %v2561 = vadd.f32 %v2447, %v2449
    %2562 = vadd.xlane.f32.xlu0 %v2561
    %v2563 = vpop.xlane.xlu0 %2562
    %v2564 = vadd.f32 %v2451, %v2453
    %2565 = vadd.xlane.f32.xlu0 %v2564
    %v2566 = vpop.xlane.xlu0 %2565
    %v2567 = vadd.f32 %v2455, %v2457
    %2568 = vadd.xlane.f32.xlu0 %v2567
    %v2569 = vpop.xlane.xlu0 %2568
    %v2570 = vadd.f32 %v2459, %v2461
    %2571 = vadd.xlane.f32.xlu0 %v2570
    %v2572 = vpop.xlane.xlu0 %2571
    %v2573 = vadd.f32 %v2463, %v2465
    %2574 = vadd.xlane.f32.xlu0 %v2573
    %v2575 = vpop.xlane.xlu0 %2574
    %v2576 = vadd.f32 %v2467, %v2469
    %2577 = vadd.xlane.f32.xlu0 %v2576
    %v2578 = vpop.xlane.xlu0 %2577
    %v2579 = vadd.f32 %v2471, %v2473
    %2580 = vadd.xlane.f32.xlu0 %v2579
    %v2581 = vpop.xlane.xlu0 %2580
    %v2582 = vadd.f32 %v2475, %v2477
    %2583 = vadd.xlane.f32.xlu0 %v2582
    %v2584 = vpop.xlane.xlu0 %2583
    %v2585 = vadd.f32 %v2479, %v2481
    %2586 = vadd.xlane.f32.xlu0 %v2585
    %v2587 = vpop.xlane.xlu0 %2586
    %v2588 = vadd.f32 %v2483, %v2485
    %2589 = vadd.xlane.f32.xlu0 %v2588
    %v2590 = vpop.xlane.xlu0 %2589
    %v2591 = vadd.f32 %v2487, %v2489
    %2592 = vadd.xlane.f32.xlu0 %v2591
    %v2593 = vpop.xlane.xlu0 %2592
    %v2594 = vadd.f32 %v2491, %v2493
    %2595 = vadd.xlane.f32.xlu0 %v2594
    %v2596 = vpop.xlane.xlu0 %2595
    %v2597 = vadd.f32 %v2495, %v2497
    %2598 = vadd.xlane.f32.xlu0 %v2597
    %v2599 = vpop.xlane.xlu0 %2598
    %v2600 = vadd.f32 %v2499, %v2501
    %2601 = vadd.xlane.f32.xlu0 %v2600
    %v2602 = vpop.xlane.xlu0 %2601
    %v2603 = vadd.f32 %v2503, %v2505
    %2604 = vadd.xlane.f32.xlu0 %v2603
    %v2605 = vpop.xlane.xlu0 %2604
    %v2606 = vadd.f32 %v2507, %v2509
    %2607 = vadd.xlane.f32.xlu0 %v2606
    %v2608 = vpop.xlane.xlu0 %2607
    %v2609 = vadd.f32 %v2511, %v2513
    %2610 = vadd.xlane.f32.xlu0 %v2609
    %v2611 = vpop.xlane.xlu0 %2610
    %v2612 = vadd.f32 %v2515, %v2517
    %2613 = vadd.xlane.f32.xlu0 %v2612
    %v2614 = vpop.xlane.xlu0 %2613
    %v2615 = vadd.f32 %v2519, %v2521
    %2616 = vadd.xlane.f32.xlu0 %v2615
    %v2617 = vpop.xlane.xlu0 %2616
    %v2618 = vrcp.pop %v2524
    %v2619 = vrcp.pop %v2527
    %v2620 = vrcp.pop %v2530
    %v2621 = vrcp.pop %v2533
    %v2622 = vrcp.pop %v2536
    %v2623 = vrcp.pop %v2539
    %v2624 = vrcp.pop %v2542
    %v2625 = vrcp.pop %v2545
    %v2626 = vrcp.pop %v2548
    %v2627 = vrcp.pop %v2551
    %v2628 = vrcp.pop %v2554
    %v2629 = vrcp.pop %v2557
    %v2630 = vrcp.pop %v2560
    %v2631 = vrcp.pop %v2563
    %v2632 = vrcp.pop %v2566
    %v2633 = vrcp.pop %v2569
    %v2634 = vrcp.pop %v2572
    %v2635 = vrcp.pop %v2575
    %v2636 = vrcp.pop %v2578
    %v2637 = vrcp.pop %v2581
    %v2638 = vrcp.pop %v2584
    %v2639 = vrcp.pop %v2587
    %v2640 = vrcp.pop %v2590
    %v2641 = vrcp.pop %v2593
    %v2642 = vrcp.pop %v2596
    %v2643 = vrcp.pop %v2599
    %v2644 = vrcp.pop %v2602
    %v2645 = vrcp.pop %v2605
    %v2646 = vrcp.pop %v2608
    %v2647 = vrcp.pop %v2611
    %v2648 = vrcp.pop %v2614
    %v2649 = vrcp.pop %v2617
    %v2650 = vmul.f32 %v2395, %v2618
    %v2651 = vmul.f32 %v2397, %v2618
    %v2652 = vmul.f32 %v2399, %v2619
    %v2653 = vmul.f32 %v2401, %v2619
    %v2654 = vmul.f32 %v2403, %v2620
    %v2655 = vmul.f32 %v2405, %v2620
    %v2656 = vmul.f32 %v2407, %v2621
    %v2657 = vmul.f32 %v2409, %v2621
    %v2658 = vmul.f32 %v2411, %v2622
    %v2659 = vmul.f32 %v2413, %v2622
    %v2660 = vmul.f32 %v2415, %v2623
    %v2661 = vmul.f32 %v2417, %v2623
    %v2662 = vmul.f32 %v2419, %v2624
    %v2663 = vmul.f32 %v2421, %v2624
    %v2664 = vmul.f32 %v2423, %v2625
    %v2665 = vmul.f32 %v2425, %v2625
    %v2666 = vmul.f32 %v2427, %v2626
    %v2667 = vmul.f32 %v2429, %v2626
    %v2668 = vmul.f32 %v2431, %v2627
    %v2669 = vmul.f32 %v2433, %v2627
    %v2670 = vmul.f32 %v2435, %v2628
    %v2671 = vmul.f32 %v2437, %v2628
    %v2672 = vmul.f32 %v2439, %v2629
    %v2673 = vmul.f32 %v2441, %v2629
    %v2674 = vmul.f32 %v2443, %v2630
    %v2675 = vmul.f32 %v2445, %v2630
    %v2676 = vmul.f32 %v2447, %v2631
    %v2677 = vmul.f32 %v2449, %v2631
    %v2678 = vmul.f32 %v2451, %v2632
    %v2679 = vmul.f32 %v2453, %v2632
    %v2680 = vmul.f32 %v2455, %v2633
    %v2681 = vmul.f32 %v2457, %v2633
    %v2682 = vmul.f32 %v2459, %v2634
    %v2683 = vmul.f32 %v2461, %v2634
    %v2684 = vmul.f32 %v2463, %v2635
    %v2685 = vmul.f32 %v2465, %v2635
    %v2686 = vmul.f32 %v2467, %v2636
    %v2687 = vmul.f32 %v2469, %v2636
    %v2688 = vmul.f32 %v2471, %v2637
    %v2689 = vmul.f32 %v2473, %v2637
    %v2690 = vmul.f32 %v2475, %v2638
    %v2691 = vmul.f32 %v2477, %v2638
    %v2692 = vmul.f32 %v2479, %v2639
    %v2693 = vmul.f32 %v2481, %v2639
    %v2694 = vmul.f32 %v2483, %v2640
    %v2695 = vmul.f32 %v2485, %v2640
    %v2696 = vmul.f32 %v2487, %v2641
    %v2697 = vmul.f32 %v2489, %v2641
    %v2698 = vmul.f32 %v2491, %v2642
    %v2699 = vmul.f32 %v2493, %v2642
    %v2700 = vmul.f32 %v2495, %v2643
    %v2701 = vmul.f32 %v2497, %v2643
    %v2702 = vmul.f32 %v2499, %v2644
    %v2703 = vmul.f32 %v2501, %v2644
    %v2704 = vmul.f32 %v2503, %v2645
    %v2705 = vmul.f32 %v2505, %v2645
    %v2706 = vmul.f32 %v2507, %v2646
    %v2707 = vmul.f32 %v2509, %v2646
    %v2708 = vmul.f32 %v2511, %v2647
    %v2709 = vmul.f32 %v2513, %v2647
    %v2710 = vmul.f32 %v2515, %v2648
    %v2711 = vmul.f32 %v2517, %v2648
    %v2712 = vmul.f32 %v2519, %v2649
    %v2713 = vmul.f32 %v2521, %v2649
    %s2714 = scalar_lea.vmem [#allocation11], 512
    %2715 = vst [vmem:[%s2714] sm:$0xff] %v2650
    %2716 = vst [vmem:[%s2714 + $0x8] sm:$0xff] %v2651
    %2717 = vst [vmem:[%s2714 + $0x10] sm:$0xff] %v2652
    %2718 = vst [vmem:[%s2714 + $0x18] sm:$0xff] %v2653
    %2719 = vst [vmem:[%s2714 + $0x20] sm:$0xff] %v2654
    %2720 = vst [vmem:[%s2714 + $0x28] sm:$0xff] %v2655
    %2721 = vst [vmem:[%s2714 + $0x30] sm:$0xff] %v2656
    %2722 = vst [vmem:[%s2714 + $0x38] sm:$0xff] %v2657
    %2723 = vst [vmem:[%s2714 + $0x40] sm:$0xff] %v2658
    %2724 = vst [vmem:[%s2714 + $0x48] sm:$0xff] %v2659
    %2725 = vst [vmem:[%s2714 + $0x50] sm:$0xff] %v2660
    %2726 = vst [vmem:[%s2714 + $0x58] sm:$0xff] %v2661
    %2727 = vst [vmem:[%s2714 + $0x60] sm:$0xff] %v2662
    %2728 = vst [vmem:[%s2714 + $0x68] sm:$0xff] %v2663
    %2729 = vst [vmem:[%s2714 + $0x70] sm:$0xff] %v2664
    %2730 = vst [vmem:[%s2714 + $0x78] sm:$0xff] %v2665
    %2731 = vst [vmem:[%s2714 + $0x80] sm:$0xff] %v2666
    %2732 = vst [vmem:[%s2714 + $0x88] sm:$0xff] %v2667
    %2733 = vst [vmem:[%s2714 + $0x90] sm:$0xff] %v2668
    %2734 = vst [vmem:[%s2714 + $0x98] sm:$0xff] %v2669
    %2735 = vst [vmem:[%s2714 + $0xa0] sm:$0xff] %v2670
    %2736 = vst [vmem:[%s2714 + $0xa8] sm:$0xff] %v2671
    %2737 = vst [vmem:[%s2714 + $0xb0] sm:$0xff] %v2672
    %2738 = vst [vmem:[%s2714 + $0xb8] sm:$0xff] %v2673
    %2739 = vst [vmem:[%s2714 + $0xc0] sm:$0xff] %v2674
    %2740 = vst [vmem:[%s2714 + $0xc8] sm:$0xff] %v2675
    %2741 = vst [vmem:[%s2714 + $0xd0] sm:$0xff] %v2676
    %2742 = vst [vmem:[%s2714 + $0xd8] sm:$0xff] %v2677
    %2743 = vst [vmem:[%s2714 + $0xe0] sm:$0xff] %v2678
    %2744 = vst [vmem:[%s2714 + $0xe8] sm:$0xff] %v2679
    %2745 = vst [vmem:[%s2714 + $0xf0] sm:$0xff] %v2680
    %2746 = vst [vmem:[%s2714 + $0xf8] sm:$0xff] %v2681
    %2747 = vst [vmem:[%s2714 + $0x100] sm:$0xff] %v2682
    %2748 = vst [vmem:[%s2714 + $0x108] sm:$0xff] %v2683
    %2749 = vst [vmem:[%s2714 + $0x110] sm:$0xff] %v2684
    %2750 = vst [vmem:[%s2714 + $0x118] sm:$0xff] %v2685
    %2751 = vst [vmem:[%s2714 + $0x120] sm:$0xff] %v2686
    %2752 = vst [vmem:[%s2714 + $0x128] sm:$0xff] %v2687
    %2753 = vst [vmem:[%s2714 + $0x130] sm:$0xff] %v2688
    %2754 = vst [vmem:[%s2714 + $0x138] sm:$0xff] %v2689
    %2755 = vst [vmem:[%s2714 + $0x140] sm:$0xff] %v2690
    %2756 = vst [vmem:[%s2714 + $0x148] sm:$0xff] %v2691
    %2757 = vst [vmem:[%s2714 + $0x150] sm:$0xff] %v2692
    %2758 = vst [vmem:[%s2714 + $0x158] sm:$0xff] %v2693
    %2759 = vst [vmem:[%s2714 + $0x160] sm:$0xff] %v2694
    %2760 = vst [vmem:[%s2714 + $0x168] sm:$0xff] %v2695
    %2761 = vst [vmem:[%s2714 + $0x170] sm:$0xff] %v2696
    %2762 = vst [vmem:[%s2714 + $0x178] sm:$0xff] %v2697
    %2763 = vst [vmem:[%s2714 + $0x180] sm:$0xff] %v2698
    %2764 = vst [vmem:[%s2714 + $0x188] sm:$0xff] %v2699
    %2765 = vst [vmem:[%s2714 + $0x190] sm:$0xff] %v2700
    %2766 = vst [vmem:[%s2714 + $0x198] sm:$0xff] %v2701
    %2767 = vst [vmem:[%s2714 + $0x1a0] sm:$0xff] %v2702
    %2768 = vst [vmem:[%s2714 + $0x1a8] sm:$0xff] %v2703
    %2769 = vst [vmem:[%s2714 + $0x1b0] sm:$0xff] %v2704
    %2770 = vst [vmem:[%s2714 + $0x1b8] sm:$0xff] %v2705
    %2771 = vst [vmem:[%s2714 + $0x1c0] sm:$0xff] %v2706
    %2772 = vst [vmem:[%s2714 + $0x1c8] sm:$0xff] %v2707
    %2773 = vst [vmem:[%s2714 + $0x1d0] sm:$0xff] %v2708
    %2774 = vst [vmem:[%s2714 + $0x1d8] sm:$0xff] %v2709
    %2775 = vst [vmem:[%s2714 + $0x1e0] sm:$0xff] %v2710
    %2776 = vst [vmem:[%s2714 + $0x1e8] sm:$0xff] %v2711
    %2777 = vst [vmem:[%s2714 + $0x1f0] sm:$0xff] %v2712
    %2778 = vst [vmem:[%s2714 + $0x1f8] sm:$0xff] %v2713
    %v2781 = vrot.slane %v74, 4
    %v2782 = vrot.slane %v75, 4
    %v2787 = vrot.slane %v72, 4
    %v2788 = vrot.slane %v73, 4
    %2791 = vmatprep.subr.mxu0 %v2651
    %2792 = vmatpush1.xpose.msra.mxu0 %v2650
    %2793 = vmatprep.subr.mxu0 %v2653
    %2794 = vmatpush1.xpose.msra.mxu0 %v2652
    %2795 = vmatprep.subr.mxu0 %v2655
    %2796 = vmatpush1.xpose.msra.mxu0 %v2654
    %2797 = vmatprep.subr.mxu0 %v2657
    %2798 = vmatpush1.xpose.msra.mxu0 %v2656
    %2799 = vmatprep.subr.mxu0 %v2659
    %2800 = vmatpush1.xpose.msra.mxu0 %v2658
    %2801 = vmatprep.subr.mxu0 %v2661
    %2802 = vmatpush1.xpose.msra.mxu0 %v2660
    %2803 = vmatprep.subr.mxu0 %v2663
    %2804 = vmatpush1.xpose.msra.mxu0 %v2662
    %2805 = vmatprep.subr.mxu0 %v2665
    %2806 = vmatpush1.xpose.msra.mxu0 %v2664
    %2807 = vmatprep.subr.mxu0 %v2667
    %2808 = vmatpush1.xpose.msra.mxu0 %v2666
    %2809 = vmatprep.subr.mxu0 %v2669
    %2810 = vmatpush1.xpose.msra.mxu0 %v2668
    %2811 = vmatprep.subr.mxu0 %v2671
    %2812 = vmatpush1.xpose.msra.mxu0 %v2670
    %2813 = vmatprep.subr.mxu0 %v2673
    %2814 = vmatpush1.xpose.msra.mxu0 %v2672
    %2815 = vmatprep.subr.mxu0 %v2675
    %2816 = vmatpush1.xpose.msra.mxu0 %v2674
    %2817 = vmatprep.subr.mxu0 %v2677
    %2818 = vmatpush1.xpose.msra.mxu0 %v2676
    %2819 = vmatprep.subr.mxu0 %v2679
    %2820 = vmatpush1.xpose.msra.mxu0 %v2678
    %2821 = vmatprep.subr.mxu0 %v2681
    %2822 = vmatpush1.xpose.msra.mxu0 %v2680
    %2823 = vmatprep.subr.mxu0 %v2683
    %2824 = vmatpush1.xpose.msra.mxu0 %v2682
    %2825 = vmatprep.subr.mxu0 %v2685
    %2826 = vmatpush1.xpose.msra.mxu0 %v2684
    %2827 = vmatprep.subr.mxu0 %v2687
    %2828 = vmatpush1.xpose.msra.mxu0 %v2686
    %2829 = vmatprep.subr.mxu0 %v2689
    %2830 = vmatpush1.xpose.msra.mxu0 %v2688
    %2831 = vmatprep.subr.mxu0 %v2691
    %2832 = vmatpush1.xpose.msra.mxu0 %v2690
    %2833 = vmatprep.subr.mxu0 %v2693
    %2834 = vmatpush1.xpose.msra.mxu0 %v2692
    %2835 = vmatprep.subr.mxu0 %v2695
    %2836 = vmatpush1.xpose.msra.mxu0 %v2694
    %2837 = vmatprep.subr.mxu0 %v2697
    %2838 = vmatpush1.xpose.msra.mxu0 %v2696
    %2839 = vmatprep.subr.mxu0 %v2699
    %2840 = vmatpush1.xpose.msra.mxu0 %v2698
    %2841 = vmatprep.subr.mxu0 %v2701
    %2842 = vmatpush1.xpose.msra.mxu0 %v2700
    %2843 = vmatprep.subr.mxu0 %v2703
    %2844 = vmatpush1.xpose.msra.mxu0 %v2702
    %2845 = vmatprep.subr.mxu0 %v2705
    %2846 = vmatpush1.xpose.msra.mxu0 %v2704
    %2847 = vmatprep.subr.mxu0 %v2707
    %2848 = vmatpush1.xpose.msra.mxu0 %v2706
    %2849 = vmatprep.subr.mxu0 %v2709
    %2850 = vmatpush1.xpose.msra.mxu0 %v2708
    %2851 = vmatprep.subr.mxu0 %v2711
    %2852 = vmatpush1.xpose.msra.mxu0 %v2710
    %2853 = vmatprep.subr.mxu0 %v2713
    %2854 = vmatpush1.xpose.msra.mxu0 %v2712
    %2855 = vmatprep.mubr.f32.mxu0 %v2782
    %2856 = vmatmul.mubr.f32.gmra.mrb[0].mxu0 %v2781
    %v2857 = vpop.f32.mrb[0].mxu0
    %v2858 = vadd.f32 %v2787, %v2857
    %v2859 = vpop.f32.mrb[0].mxu0
    %v2860 = vadd.f32 %v2788, %v2859
    %2861 = vdwg.mxu0
    %v2864 = vrot.slane %v2858, 4
    %v2865 = vrot.slane %v2860, 4
    %2868 = vst [vmem:[#allocation10] sm:$0xf0] %v2864
    %2869 = vst [vmem:[#allocation10 + $0x8] sm:$0xf0] %v2865
    // Predicated region
    $region34: #{tpu_custom_call.1} parent=1 // pred_check
      _
    $region35: #{tpu_custom_call.1} parent=1 // pred_check_branch
      %2871 = sbr.rel (0) target = $region37
    $region36: #{tpu_custom_call.1} parent=1 // pred_region
      %s2873 = ssub.s32 256, 256
      %2874 = vsyncadd [#allocation4], %s2873
      %s2876 = sshll.u32 [#allocation10], 4
      %s2877 = int_to_ptr.vmem [resolvable:$true] %s2876
      %2879 = dma.vmem_to_hbm [thread:$0]  %s2877, 256, %s4, [#allocation4]
    $region37: #{tpu_custom_call.1} parent=1 // pred_fallthru
      _
    // Predicated region
    $region38: #{tpu_custom_call.1} parent=1 // pred_check
      _
    $region39: #{tpu_custom_call.1} parent=1 // pred_check_branch
      %2881 = sbr.rel (0) target = $region41
    $region40: #{tpu_custom_call.1} parent=1 // pred_region
      %s2883 = ssub.s32 16384, 16384
      %2884 = vsyncadd [#allocation12], %s2883
      %s2885 = sshll.u32 [#allocation11], 4
      %s2886 = int_to_ptr.vmem [resolvable:$true] %s2885
      %2891 = dma.vmem_to_hbm [thread:$0]  %s2886, 16384, %s5, [#allocation12], 256, 256, 16
    $region41: #{tpu_custom_call.1} parent=1 // pred_fallthru
      _
    // Predicated region
    $region42: #{tpu_custom_call.1} parent=1 // pred_check
      _
    $region43: #{tpu_custom_call.1} parent=1 // pred_check_branch
      %2893 = sbr.rel (0) target = $region45
    $region44: #{tpu_custom_call.1} parent=1 // pred_region
      %2894 = dma.done [#allocation4], 256
    $region45: #{tpu_custom_call.1} parent=1 // pred_fallthru
      _
    // Predicated region
    $region46: #{tpu_custom_call.1} parent=1 // pred_check
      _
    $region47: #{tpu_custom_call.1} parent=1 // pred_check_branch
      %2896 = sbr.rel (0) target = $region49
    $region48: #{tpu_custom_call.1} parent=1 // pred_region
      %2897 = dma.done [#allocation12], 16384
    $region49: #{tpu_custom_call.1} parent=1 // pred_fallthru
      _
    %2898 = vsyncpa [#allocation3], 1
    %2899 = vsyncpa [#allocation6], 1
    %2900 = vsyncpa [#allocation9], 1
    %2901 = vsyncpa [#allocation4], 1
    %2902 = vsyncpa [#allocation12], 1

</llo_original>
